<compile_context>
chip_gen: v5e
topology: v5e:2x2
jax: 0.10.0
libtpu: 0.0.40
codegen_flags: <defaults>
</compile_context>

<pallas_src>
import functools

import jax
import jax.numpy as jnp
from jax.experimental import pallas as pl
from jax.experimental.pallas import tpu as pltpu


def _round_up(n, m):
    return (n + m - 1) // m * m


def _decoder_kernel(alpha_ref,                   # SMEM (3,) PReLU slopes (f32)
                    x_ref,                       # (TB, D_in)         f32
                    w1_ref, b1_ref,              # (D_in,128)  bf16, (1,128)     ew
                    w2_ref, b2_ref,              # (128,256)   bf16, (1,256)     ew
                    w3_ref, b3_ref,              # (256,512)   bf16, (1,512)     ew
                    w4_ref, b4_ref,              # (512,D_out_p) bf16, (1,D_out_p) f32
                    o_ref,                       # (TB, D_out_p)      f32
                    *, ew_dtype):
    def layer(h, w_ref, b_ref, k):
        # bf16 MXU operands, f32 accumulation; elementwise epilogue in ew_dtype.
        h = jnp.dot(h.astype(jnp.bfloat16), w_ref[...],
                    preferred_element_type=jnp.float32)
        h = h.astype(ew_dtype) + b_ref[...]
        # Broadcast the f32 SMEM scalar via a (1,1) vector, then cast (avoids any
        # reliance on scalar bf16 support in the scalar core).
        a = jnp.full((1, 1), alpha_ref[k], dtype=jnp.float32).astype(ew_dtype)
        return jnp.where(h > 0, h, a * h)        # PReLU (where-form: slope may be >1)

    h = layer(x_ref[...], w1_ref, b1_ref, 0)
    h = layer(h, w2_ref, b2_ref, 1)
    h = layer(h, w3_ref, b3_ref, 2)
    o = jnp.dot(h.astype(jnp.bfloat16), w4_ref[...],
                preferred_element_type=jnp.float32)
    o_ref[...] = (o + b4_ref[...]).astype(o_ref.dtype)


def _has_bf16_vpu():
    # v6e / v7x have a bf16 VALU; v5 and older do not -> keep the epilogue in f32 there.
    try:
        kind = jax.devices()[0].device_kind.lower()
        return not any(v in kind for v in ("v2", "v3", "v4", "v5"))
    except Exception:
        return True


@functools.partial(jax.jit, static_argnames=("tile_b", "bf16_epilogue"))
def decoder_s2d(x, params, alphas, *, tile_b=None, bf16_epilogue=None):
    """x: (B, input_size) f32. params: w1..w4 of shape (in,out), b1..b4. alphas: (3,) f32."""
    B, D_in = x.shape
    D_out = params["w4"].shape[1]
    D_out_p = _round_up(D_out, 128)              # lane-dense (unmasked) output stores

    if bf16_epilogue is None:
        bf16_epilogue = _has_bf16_vpu()
    ew_dtype = jnp.bfloat16 if bf16_epilogue else jnp.float32

    if tile_b is None:
        if B < 256:
            tile_b = B                           # grid=(1,): launch-overhead-bound regime
        else:
            # even >=2-step grid (keeps both v7x TensorCores fed), <=1024 rows / tile
            tile_b = min(1024, _round_up(pl.cdiv(B, 2), 128))
    grid = (pl.cdiv(B, tile_b),)

    # Resident weights as bf16 MXU operands; only w4/b4 need 128-padding of D_out.
    w1 = params["w1"].astype(jnp.bfloat16)
    w2 = params["w2"].astype(jnp.bfloat16)
    w3 = params["w3"].astype(jnp.bfloat16)
    b1 = params["b1"].reshape(1, -1).astype(ew_dtype)
    b2 = params["b2"].reshape(1, -1).astype(ew_dtype)
    b3 = params["b3"].reshape(1, -1).astype(ew_dtype)
    if D_out_p == D_out:
        w4 = params["w4"].astype(jnp.bfloat16)
        b4 = params["b4"].reshape(1, -1).astype(jnp.float32)
    else:
        w4 = jnp.zeros((512, D_out_p), jnp.bfloat16).at[:, :D_out].set(
            params["w4"].astype(jnp.bfloat16))
        b4 = jnp.zeros((1, D_out_p), jnp.float32).at[:, :D_out].set(
            params["b4"].reshape(1, -1).astype(jnp.float32))

    def full(shape):
        # full-array block, resident across the batch grid (constant index map)
        return pl.BlockSpec(shape, lambda i, _alphas: (0,) * len(shape))

    grid_spec = pltpu.PrefetchScalarGridSpec(
        num_scalar_prefetch=1,                   # alphas -> SMEM
        grid=grid,
        in_specs=[
            pl.BlockSpec((tile_b, D_in), lambda i, _alphas: (i, 0)),   # raw f32 x tile
            full(w1.shape), full(b1.shape),
            full(w2.shape), full(b2.shape),
            full(w3.shape), full(b3.shape),
            full(w4.shape), full(b4.shape),
        ],
        out_specs=pl.BlockSpec((tile_b, D_out_p), lambda i, _alphas: (i, 0)),
    )

    bias_isz = 2 if bf16_epilogue else 4
    flops = 2 * B * (D_in * 128 + 128 * 256 + 256 * 512 + 512 * D_out_p)
    bytes_accessed = (
        x.size * 4
        + (w1.size + w2.size + w3.size + w4.size) * 2
        + (b1.size + b2.size + b3.size) * bias_isz + b4.size * 4
        + B * D_out_p * 4
    )

    out_p = pl.pallas_call(
        functools.partial(_decoder_kernel, ew_dtype=ew_dtype),
        out_shape=jax.ShapeDtypeStruct((B, D_out_p), jnp.float32),
        grid_spec=grid_spec,
        compiler_params=pltpu.CompilerParams(
            dimension_semantics=("parallel",)),
        cost_estimate=pl.CostEstimate(
            flops=flops, transcendentals=0, bytes_accessed=bytes_accessed),
    )(alphas, x, w1, b1, w2, b2, w3, b3, w4, b4)

    return out_p if D_out_p == D_out else out_p[:, :D_out]


def init_params(key, input_size, output_size):
    """Deterministic synthetic init (PyTorch-like uniform fan-in scaling)."""
    dims = [(input_size, 128), (128, 256), (256, 512), (512, output_size)]
    params = {}
    for idx, (din, dout) in enumerate(dims, start=1):
        key, kw, kb = jax.random.split(key, 3)
        bound = 1.0 / jnp.sqrt(jnp.float32(din))
        params[f"w{idx}"] = jax.random.uniform(
            kw, (din, dout), jnp.float32, minval=-bound, maxval=bound)
        params[f"b{idx}"] = jax.random.uniform(
            kb, (dout,), jnp.float32, minval=-bound, maxval=bound)
    alphas = jnp.full((3,), 0.25, jnp.float32)   # PReLU default init (num_parameters=1)
    return params, alphas


def decoder_s2d_ref(x, params, alphas):
    """Pure-JAX f32 reference for correctness checking."""
    h = x @ params["w1"] + params["b1"]
    h = jnp.where(h > 0, h, alphas[0] * h)
    h = h @ params["w2"] + params["b2"]
    h = jnp.where(h > 0, h, alphas[1] * h)
    h = h @ params["w3"] + params["b3"]
    h = jnp.where(h > 0, h, alphas[2] * h)
    return h @ params["w4"] + params["b4"]


if __name__ == "__main__":
    input_size, output_size = 32, 64
    batch = 256

    key = jax.random.PRNGKey(0)
    key, kx = jax.random.split(key)
    x = jax.random.normal(kx, (batch, input_size), jnp.float32)

    params, alphas = init_params(key, input_size, output_size)

    # Default tile selection: B=256 -> tile_b=128 -> grid=(2,) "parallel"
    # (keeps both v7x TensorCores busy; ~one extra 0.35 us step on single-TC chips).
    out = decoder_s2d(x, params, alphas)
    out = jax.block_until_ready(out)

    ref = decoder_s2d_ref(x, params, alphas)
    assert out.shape == (batch, output_size)
    # bf16 matmul operands (+ bf16 epilogue on v6e/v7x) vs f32 reference -> loosened tol.
    assert jnp.allclose(out, ref, atol=5e-2, rtol=5e-2), "mismatch vs reference"

    print("KERNEL_OK")
</pallas_src>

<mosaic_0001>
module attributes {stable_mosaic.version = 11 : i64} {
  func.func @_decoder_kernel(%arg0: i32, %arg1: memref<3xf32, #tpu.memory_space<smem>>, %arg2: memref<128x32xf32, #tpu.memory_space<vmem>>, %arg3: memref<32x128xbf16, #tpu.memory_space<vmem>>, %arg4: memref<1x128xbf16, #tpu.memory_space<vmem>>, %arg5: memref<128x256xbf16, #tpu.memory_space<vmem>>, %arg6: memref<1x256xbf16, #tpu.memory_space<vmem>>, %arg7: memref<256x512xbf16, #tpu.memory_space<vmem>>, %arg8: memref<1x512xbf16, #tpu.memory_space<vmem>>, %arg9: memref<512x128xbf16, #tpu.memory_space<vmem>>, %arg10: memref<1x128xf32, #tpu.memory_space<vmem>>, %arg11: memref<128x128xf32, #tpu.memory_space<vmem>>) attributes {dimension_semantics = [#tpu.dimension_semantics<parallel>], iteration_bounds = array<i64: 2>, scalar_prefetch = 1 : i64, scratch_operands = 0 : i64, tpu.core_type = #tpu.core_type<tc>, window_params = [{transform_indices = @transform_0, window_bounds = array<i64: 128, 32>}, {pipeline_mode = #tpu.pipeline_mode<synchronous>, transform_indices = @transform_1, window_bounds = array<i64: 32, 128>}, {pipeline_mode = #tpu.pipeline_mode<synchronous>, transform_indices = @transform_2, window_bounds = array<i64: 1, 128>}, {pipeline_mode = #tpu.pipeline_mode<synchronous>, transform_indices = @transform_3, window_bounds = array<i64: 128, 256>}, {pipeline_mode = #tpu.pipeline_mode<synchronous>, transform_indices = @transform_4, window_bounds = array<i64: 1, 256>}, {pipeline_mode = #tpu.pipeline_mode<synchronous>, transform_indices = @transform_5, window_bounds = array<i64: 256, 512>}, {pipeline_mode = #tpu.pipeline_mode<synchronous>, transform_indices = @transform_6, window_bounds = array<i64: 1, 512>}, {pipeline_mode = #tpu.pipeline_mode<synchronous>, transform_indices = @transform_7, window_bounds = array<i64: 512, 128>}, {pipeline_mode = #tpu.pipeline_mode<synchronous>, transform_indices = @transform_8, window_bounds = array<i64: 1, 128>}, {transform_indices = @transform_9, window_bounds = array<i64: 128, 128>}]} {
    %c0 = arith.constant 0 : index
    %c0_0 = arith.constant 0 : index
    %0 = vector.load %arg2[%c0, %c0_0] : memref<128x32xf32, #tpu.memory_space<vmem>>, vector<128x32xf32>
    %1 = arith.truncf %0 : vector<128x32xf32> to vector<128x32xbf16>
    %c0_1 = arith.constant 0 : index
    %c0_2 = arith.constant 0 : index
    %2 = vector.load %arg3[%c0_1, %c0_2] : memref<32x128xbf16, #tpu.memory_space<vmem>>, vector<32x128xbf16>
    %cst = arith.constant dense<0.000000e+00> : vector<128x128xf32>
    %3 = tpu.matmul %1, %2, %cst {dimension_numbers = #tpu.dot_dimension_numbers<[1], [0], [0], [1], [0, 0, 1, 1], [], []>} : vector<128x32xbf16>, vector<32x128xbf16>, vector<128x128xf32> -> vector<128x128xf32>
    %4 = arith.truncf %3 : vector<128x128xf32> to vector<128x128xbf16>
    %c0_3 = arith.constant 0 : index
    %c0_4 = arith.constant 0 : index
    %5 = vector.load %arg4[%c0_3, %c0_4] : memref<1x128xbf16, #tpu.memory_space<vmem>>, vector<1x128xbf16>
    %6 = vector.broadcast %5 : vector<1x128xbf16> to vector<128x128xbf16>
    %7 = arith.addf %4, %6 : vector<128x128xbf16>
    %c0_5 = arith.constant 0 : index
    %8 = memref.load %arg1[%c0_5] : memref<3xf32, #tpu.memory_space<smem>>
    %9 = vector.broadcast %8 : f32 to vector<1x1xf32>
    %10 = arith.truncf %9 : vector<1x1xf32> to vector<1x1xbf16>
    %cst_6 = arith.constant 0.000000e+00 : bf16
    %11 = vector.broadcast %cst_6 : bf16 to vector<128x128xbf16>
    %12 = arith.cmpf ogt, %7, %11 : vector<128x128xbf16>
    %13 = vector.broadcast %10 : vector<1x1xbf16> to vector<128x128xbf16>
    %14 = arith.mulf %13, %7 : vector<128x128xbf16>
    %15 = arith.select %12, %7, %14 : vector<128x128xi1>, vector<128x128xbf16>
    %c0_7 = arith.constant 0 : index
    %c0_8 = arith.constant 0 : index
    %16 = vector.load %arg5[%c0_7, %c0_8] : memref<128x256xbf16, #tpu.memory_space<vmem>>, vector<128x256xbf16>
    %cst_9 = arith.constant dense<0.000000e+00> : vector<128x256xf32>
    %17 = tpu.matmul %15, %16, %cst_9 {dimension_numbers = #tpu.dot_dimension_numbers<[1], [0], [0], [1], [0, 0, 1, 1], [], []>} : vector<128x128xbf16>, vector<128x256xbf16>, vector<128x256xf32> -> vector<128x256xf32>
    %18 = arith.truncf %17 : vector<128x256xf32> to vector<128x256xbf16>
    %c0_10 = arith.constant 0 : index
    %c0_11 = arith.constant 0 : index
    %19 = vector.load %arg6[%c0_10, %c0_11] : memref<1x256xbf16, #tpu.memory_space<vmem>>, vector<1x256xbf16>
    %20 = vector.broadcast %19 : vector<1x256xbf16> to vector<128x256xbf16>
    %21 = arith.addf %18, %20 : vector<128x256xbf16>
    %c1 = arith.constant 1 : index
    %22 = memref.load %arg1[%c1] : memref<3xf32, #tpu.memory_space<smem>>
    %23 = vector.broadcast %22 : f32 to vector<1x1xf32>
    %24 = arith.truncf %23 : vector<1x1xf32> to vector<1x1xbf16>
    %cst_12 = arith.constant 0.000000e+00 : bf16
    %25 = vector.broadcast %cst_12 : bf16 to vector<128x256xbf16>
    %26 = arith.cmpf ogt, %21, %25 : vector<128x256xbf16>
    %27 = vector.broadcast %24 : vector<1x1xbf16> to vector<128x256xbf16>
    %28 = arith.mulf %27, %21 : vector<128x256xbf16>
    %29 = arith.select %26, %21, %28 : vector<128x256xi1>, vector<128x256xbf16>
    %c0_13 = arith.constant 0 : index
    %c0_14 = arith.constant 0 : index
    %30 = vector.load %arg7[%c0_13, %c0_14] : memref<256x512xbf16, #tpu.memory_space<vmem>>, vector<256x512xbf16>
    %cst_15 = arith.constant dense<0.000000e+00> : vector<128x512xf32>
    %31 = tpu.matmul %29, %30, %cst_15 {dimension_numbers = #tpu.dot_dimension_numbers<[1], [0], [0], [1], [0, 0, 1, 1], [], []>} : vector<128x256xbf16>, vector<256x512xbf16>, vector<128x512xf32> -> vector<128x512xf32>
    %32 = arith.truncf %31 : vector<128x512xf32> to vector<128x512xbf16>
    %c0_16 = arith.constant 0 : index
    %c0_17 = arith.constant 0 : index
    %33 = vector.load %arg8[%c0_16, %c0_17] : memref<1x512xbf16, #tpu.memory_space<vmem>>, vector<1x512xbf16>
    %34 = vector.broadcast %33 : vector<1x512xbf16> to vector<128x512xbf16>
    %35 = arith.addf %32, %34 : vector<128x512xbf16>
    %c2 = arith.constant 2 : index
    %36 = memref.load %arg1[%c2] : memref<3xf32, #tpu.memory_space<smem>>
    %37 = vector.broadcast %36 : f32 to vector<1x1xf32>
    %38 = arith.truncf %37 : vector<1x1xf32> to vector<1x1xbf16>
    %cst_18 = arith.constant 0.000000e+00 : bf16
    %39 = vector.broadcast %cst_18 : bf16 to vector<128x512xbf16>
    %40 = arith.cmpf ogt, %35, %39 : vector<128x512xbf16>
    %41 = vector.broadcast %38 : vector<1x1xbf16> to vector<128x512xbf16>
    %42 = arith.mulf %41, %35 : vector<128x512xbf16>
    %43 = arith.select %40, %35, %42 : vector<128x512xi1>, vector<128x512xbf16>
    %c0_19 = arith.constant 0 : index
    %c0_20 = arith.constant 0 : index
    %44 = vector.load %arg9[%c0_19, %c0_20] : memref<512x128xbf16, #tpu.memory_space<vmem>>, vector<512x128xbf16>
    %cst_21 = arith.constant dense<0.000000e+00> : vector<128x128xf32>
    %45 = tpu.matmul %43, %44, %cst_21 {dimension_numbers = #tpu.dot_dimension_numbers<[1], [0], [0], [1], [0, 0, 1, 1], [], []>} : vector<128x512xbf16>, vector<512x128xbf16>, vector<128x128xf32> -> vector<128x128xf32>
    %c0_22 = arith.constant 0 : index
    %c0_23 = arith.constant 0 : index
    %46 = vector.load %arg10[%c0_22, %c0_23] : memref<1x128xf32, #tpu.memory_space<vmem>>, vector<1x128xf32>
    %47 = vector.broadcast %46 : vector<1x128xf32> to vector<128x128xf32>
    %48 = arith.addf %45, %47 : vector<128x128xf32>
    %c0_24 = arith.constant 0 : index
    %c0_25 = arith.constant 0 : index
    %49 = vector.load %arg11[%c0_24, %c0_25] : memref<128x128xf32, #tpu.memory_space<vmem>>, vector<128x128xf32>
    tpu.vector_store %arg11[%c0_24, %c0_25], %48 {strides = array<i32>} : memref<128x128xf32, #tpu.memory_space<vmem>>, vector<128x128xf32>,
    return
  }
  func.func @transform_0(%arg0: i32, %arg1: memref<3xf32, #tpu.memory_space<smem>>) -> (i32, i32) {
    %c0_i32 = arith.constant 0 : i32
    %c0_i32_0 = arith.constant 0 : i32
    return %arg0, %c0_i32 : i32, i32
  }
  func.func @transform_1(%arg0: i32, %arg1: memref<3xf32, #tpu.memory_space<smem>>) -> (i32, i32) {
    %c0_i32 = arith.constant 0 : i32
    %c0_i32_0 = arith.constant 0 : i32
    %c0_i32_1 = arith.constant 0 : i32
    return %c0_i32, %c0_i32_0 : i32, i32
  }
  func.func @transform_2(%arg0: i32, %arg1: memref<3xf32, #tpu.memory_space<smem>>) -> (i32, i32) {
    %c0_i32 = arith.constant 0 : i32
    %c0_i32_0 = arith.constant 0 : i32
    %c0_i32_1 = arith.constant 0 : i32
    return %c0_i32, %c0_i32_0 : i32, i32
  }
  func.func @transform_3(%arg0: i32, %arg1: memref<3xf32, #tpu.memory_space<smem>>) -> (i32, i32) {
    %c0_i32 = arith.constant 0 : i32
    %c0_i32_0 = arith.constant 0 : i32
    %c0_i32_1 = arith.constant 0 : i32
    return %c0_i32, %c0_i32_0 : i32, i32
  }
  func.func @transform_4(%arg0: i32, %arg1: memref<3xf32, #tpu.memory_space<smem>>) -> (i32, i32) {
    %c0_i32 = arith.constant 0 : i32
    %c0_i32_0 = arith.constant 0 : i32
    %c0_i32_1 = arith.constant 0 : i32
    return %c0_i32, %c0_i32_0 : i32, i32
  }
  func.func @transform_5(%arg0: i32, %arg1: memref<3xf32, #tpu.memory_space<smem>>) -> (i32, i32) {
    %c0_i32 = arith.constant 0 : i32
    %c0_i32_0 = arith.constant 0 : i32
    %c0_i32_1 = arith.constant 0 : i32
    return %c0_i32, %c0_i32_0 : i32, i32
  }
  func.func @transform_6(%arg0: i32, %arg1: memref<3xf32, #tpu.memory_space<smem>>) -> (i32, i32) {
    %c0_i32 = arith.constant 0 : i32
    %c0_i32_0 = arith.constant 0 : i32
    %c0_i32_1 = arith.constant 0 : i32
    return %c0_i32, %c0_i32_0 : i32, i32
  }
  func.func @transform_7(%arg0: i32, %arg1: memref<3xf32, #tpu.memory_space<smem>>) -> (i32, i32) {
    %c0_i32 = arith.constant 0 : i32
    %c0_i32_0 = arith.constant 0 : i32
    %c0_i32_1 = arith.constant 0 : i32
    return %c0_i32, %c0_i32_0 : i32, i32
  }
  func.func @transform_8(%arg0: i32, %arg1: memref<3xf32, #tpu.memory_space<smem>>) -> (i32, i32) {
    %c0_i32 = arith.constant 0 : i32
    %c0_i32_0 = arith.constant 0 : i32
    %c0_i32_1 = arith.constant 0 : i32
    return %c0_i32, %c0_i32_0 : i32, i32
  }
  func.func @transform_9(%arg0: i32, %arg1: memref<3xf32, #tpu.memory_space<smem>>) -> (i32, i32) {
    %c0_i32 = arith.constant 0 : i32
    %c0_i32_0 = arith.constant 0 : i32
    return %arg0, %c0_i32 : i32, i32
  }
}

</mosaic_0001>

<llo_original>
// kernel: decoder_s2d.1
$region0: #{decoder_s2d.1}
  #allocation0 [shape = 'u32[]', space=smem, size = 0x4, offset = 0x4, fixed_abs, tag = 'smem constant byte address 0x4 - core index']
  #allocation1 [shape = 'u32[72,128]{1,0:T(1,128)}', space=vmem, size = 0x9000, scoped, tag = 'internal scratch']
  #allocation2 [shape = 's32[1]{0}', space=sflag, size = 0x4, scoped, tag = 'scoped memory for decoder_s2d.1']
  #allocation3 [shape = 'u8[512]{0}', space=smem, size = 0x200, scoped, tag = 'prefetched SMEM operand 0']
  %s0 = inlined_call_operand.vmem [shape: f32[3], index: 0, kind: input, shape index: {}]
  %s1 = inlined_call_operand.vmem [shape: f32[256,32], index: 1, kind: input, shape index: {}]
  %s2 = inlined_call_operand.vmem [shape: bf16[32,128], index: 2, kind: input, shape index: {}]
  %s3 = inlined_call_operand.vmem [shape: bf16[1,128], index: 3, kind: input, shape index: {}]
  %s4 = inlined_call_operand.vmem [shape: bf16[128,256], index: 4, kind: input, shape index: {}]
  %s5 = inlined_call_operand.vmem [shape: bf16[1,256], index: 5, kind: input, shape index: {}]
  %s6 = inlined_call_operand.vmem [shape: bf16[256,512], index: 6, kind: input, shape index: {}]
  %s7 = inlined_call_operand.vmem [shape: bf16[1,512], index: 7, kind: input, shape index: {}]
  %s8 = inlined_call_operand.vmem [shape: bf16[512,128], index: 8, kind: input, shape index: {}]
  %s9 = inlined_call_operand.vmem [shape: f32[1,128], index: 9, kind: input, shape index: {}]
  %s10 = inlined_call_operand.vmem [shape: f32[256,128], index: 10, kind: output, shape index: {}]
  %s11 = sld [smem:[#allocation0]]
  $region69: #{decoder_s2d.1} parent=0
    _
  %s13 = ssub.s32 1, %s11
  %s14 = scalar_select 0, %s13, %s11
  %s16 = sshll.u32 %s0, 4
  %s17 = int_to_ptr.vmem [resolvable:$true] %s16
  %19 = dma.vmem_to_smem %s17, 16, [#allocation3], [#allocation2]
  %21 = dma.done [#allocation2], 16
  %22 = sfence
  loop: start=0, step=1, limit=4
  $region2: #{decoder_s2d.1} parent=0 // loop_pre_header
    _
  $region3: #{decoder_s2d.1} parent=0 // loop_header
    %s24 = sphi 0, %s28
    %p25 = scmp.ge.s32.totalorder %s24, 4
    %s34 = sphi 0, %s36
    %s37 = sphi 0, %s34
    %s38 = sphi 0, %s37
    %s54 = sphi 0, %s38
    %s58 = sphi 0, %s58
    %s60 = sphi 0, %s58
    %s61 = sphi 0, %s60
    %s75 = sphi 0, %s61
    %s79 = sphi 0, %s79
    %s81 = sphi 0, %s79
    %s82 = sphi 0, %s81
    %s96 = sphi 0, %s82
    %s100 = sphi 0, %s100
    %s102 = sphi 0, %s100
    %s103 = sphi 0, %s102
    %s117 = sphi 0, %s103
    %s121 = sphi 0, %s121
    %s123 = sphi 0, %s121
    %s124 = sphi 0, %s123
    %s138 = sphi 0, %s124
    %s142 = sphi 0, %s142
    %s144 = sphi 0, %s142
    %s145 = sphi 0, %s144
    %s159 = sphi 0, %s145
    %s163 = sphi 0, %s163
    %s165 = sphi 0, %s163
    %s166 = sphi 0, %s165
    %s180 = sphi 0, %s166
    %s184 = sphi 0, %s184
    %s186 = sphi 0, %s184
    %s187 = sphi 0, %s186
    %s201 = sphi 0, %s187
    %s205 = sphi 0, %s205
    %s207 = sphi 0, %s205
    %s208 = sphi 0, %s207
    %s222 = sphi 0, %s208
    %s228 = sphi 0, %s230
    %s231 = sphi 0, %s228
    %s232 = sphi 0, %s231
    %s248 = sphi 0, %s232
  $region4: #{decoder_s2d.1} parent=0 // loop_header_branch
    %27 = sbr.rel (%p25) target = $region8
  $region5: #{decoder_s2d.1} parent=0 // loop_body
    %s29 = ssub.s32 %s24, 1
    %s30 = ssub.s32 %s24, 2
    %s31 = sadd.s32 %s24, 1
    %s32 = ssub.s32 %s24, %s31
    %p33 = scmp.eq.s32.totalorder %s32, 0
    %s35 = sadd.s32 %s34, 1
    %s36 = scalar_select %p33, %s34, %s35
    %p39 = pneg %p33
    %p40 = scmp.eq.s32.totalorder %s24, 1
    %p41 = por %p39, %p40
    %p42 = scmp.ne.s32.totalorder %s34, %s37
    %p43 = scmp.eq.s32.totalorder %s24, 0
    %p44 = por %p42, %p43
    %p45 = scmp.ne.s32.totalorder %s34, %s37
    %p46 = scmp.eq.s32.totalorder %s29, 1
    %p47 = por %p45, %p46
    %p48 = scmp.ne.s32.totalorder %s37, %s38
    %p49 = scmp.eq.s32.totalorder %s29, 0
    %p50 = por %p48, %p49
    %p51 = scmp.ne.s32.totalorder %s37, %s38
    %p52 = scmp.eq.s32.totalorder %s30, 1
    %p53 = por %p51, %p52
    %p55 = scmp.ne.s32.totalorder %s38, %s54
    %p56 = scmp.eq.s32.totalorder %s30, 0
    %p57 = por %p55, %p56
    %s59 = sadd.s32 %s58, 1
    %p62 = scmp.eq.s32.totalorder %s24, 1
    %p63 = scmp.ne.s32.totalorder %s58, %s60
    %p64 = scmp.eq.s32.totalorder %s24, 0
    %p65 = por %p63, %p64
    %p66 = scmp.ne.s32.totalorder %s58, %s60
    %p67 = scmp.eq.s32.totalorder %s29, 1
    %p68 = por %p66, %p67
    %p69 = scmp.ne.s32.totalorder %s60, %s61
    %p70 = scmp.eq.s32.totalorder %s29, 0
    %p71 = por %p69, %p70
    %p72 = scmp.ne.s32.totalorder %s60, %s61
    %p73 = scmp.eq.s32.totalorder %s30, 1
    %p74 = por %p72, %p73
    %p76 = scmp.ne.s32.totalorder %s61, %s75
    %p77 = scmp.eq.s32.totalorder %s30, 0
    %p78 = por %p76, %p77
    %s80 = sadd.s32 %s79, 1
    %p83 = scmp.eq.s32.totalorder %s24, 1
    %p84 = scmp.ne.s32.totalorder %s79, %s81
    %p85 = scmp.eq.s32.totalorder %s24, 0
    %p86 = por %p84, %p85
    %p87 = scmp.ne.s32.totalorder %s79, %s81
    %p88 = scmp.eq.s32.totalorder %s29, 1
    %p89 = por %p87, %p88
    %p90 = scmp.ne.s32.totalorder %s81, %s82
    %p91 = scmp.eq.s32.totalorder %s29, 0
    %p92 = por %p90, %p91
    %p93 = scmp.ne.s32.totalorder %s81, %s82
    %p94 = scmp.eq.s32.totalorder %s30, 1
    %p95 = por %p93, %p94
    %p97 = scmp.ne.s32.totalorder %s82, %s96
    %p98 = scmp.eq.s32.totalorder %s30, 0
    %p99 = por %p97, %p98
    %s101 = sadd.s32 %s100, 1
    %p104 = scmp.eq.s32.totalorder %s24, 1
    %p105 = scmp.ne.s32.totalorder %s100, %s102
    %p106 = scmp.eq.s32.totalorder %s24, 0
    %p107 = por %p105, %p106
    %p108 = scmp.ne.s32.totalorder %s100, %s102
    %p109 = scmp.eq.s32.totalorder %s29, 1
    %p110 = por %p108, %p109
    %p111 = scmp.ne.s32.totalorder %s102, %s103
    %p112 = scmp.eq.s32.totalorder %s29, 0
    %p113 = por %p111, %p112
    %p114 = scmp.ne.s32.totalorder %s102, %s103
    %p115 = scmp.eq.s32.totalorder %s30, 1
    %p116 = por %p114, %p115
    %p118 = scmp.ne.s32.totalorder %s103, %s117
    %p119 = scmp.eq.s32.totalorder %s30, 0
    %p120 = por %p118, %p119
    %s122 = sadd.s32 %s121, 1
    %p125 = scmp.eq.s32.totalorder %s24, 1
    %p126 = scmp.ne.s32.totalorder %s121, %s123
    %p127 = scmp.eq.s32.totalorder %s24, 0
    %p128 = por %p126, %p127
    %p129 = scmp.ne.s32.totalorder %s121, %s123
    %p130 = scmp.eq.s32.totalorder %s29, 1
    %p131 = por %p129, %p130
    %p132 = scmp.ne.s32.totalorder %s123, %s124
    %p133 = scmp.eq.s32.totalorder %s29, 0
    %p134 = por %p132, %p133
    %p135 = scmp.ne.s32.totalorder %s123, %s124
    %p136 = scmp.eq.s32.totalorder %s30, 1
    %p137 = por %p135, %p136
    %p139 = scmp.ne.s32.totalorder %s124, %s138
    %p140 = scmp.eq.s32.totalorder %s30, 0
    %p141 = por %p139, %p140
    %s143 = sadd.s32 %s142, 1
    %p146 = scmp.eq.s32.totalorder %s24, 1
    %p147 = scmp.ne.s32.totalorder %s142, %s144
    %p148 = scmp.eq.s32.totalorder %s24, 0
    %p149 = por %p147, %p148
    %p150 = scmp.ne.s32.totalorder %s142, %s144
    %p151 = scmp.eq.s32.totalorder %s29, 1
    %p152 = por %p150, %p151
    %p153 = scmp.ne.s32.totalorder %s144, %s145
    %p154 = scmp.eq.s32.totalorder %s29, 0
    %p155 = por %p153, %p154
    %p156 = scmp.ne.s32.totalorder %s144, %s145
    %p157 = scmp.eq.s32.totalorder %s30, 1
    %p158 = por %p156, %p157
    %p160 = scmp.ne.s32.totalorder %s145, %s159
    %p161 = scmp.eq.s32.totalorder %s30, 0
    %p162 = por %p160, %p161
    %s164 = sadd.s32 %s163, 1
    %p167 = scmp.eq.s32.totalorder %s24, 1
    %p168 = scmp.ne.s32.totalorder %s163, %s165
    %p169 = scmp.eq.s32.totalorder %s24, 0
    %p170 = por %p168, %p169
    %p171 = scmp.ne.s32.totalorder %s163, %s165
    %p172 = scmp.eq.s32.totalorder %s29, 1
    %p173 = por %p171, %p172
    %p174 = scmp.ne.s32.totalorder %s165, %s166
    %p175 = scmp.eq.s32.totalorder %s29, 0
    %p176 = por %p174, %p175
    %p177 = scmp.ne.s32.totalorder %s165, %s166
    %p178 = scmp.eq.s32.totalorder %s30, 1
    %p179 = por %p177, %p178
    %p181 = scmp.ne.s32.totalorder %s166, %s180
    %p182 = scmp.eq.s32.totalorder %s30, 0
    %p183 = por %p181, %p182
    %s185 = sadd.s32 %s184, 1
    %p188 = scmp.eq.s32.totalorder %s24, 1
    %p189 = scmp.ne.s32.totalorder %s184, %s186
    %p190 = scmp.eq.s32.totalorder %s24, 0
    %p191 = por %p189, %p190
    %p192 = scmp.ne.s32.totalorder %s184, %s186
    %p193 = scmp.eq.s32.totalorder %s29, 1
    %p194 = por %p192, %p193
    %p195 = scmp.ne.s32.totalorder %s186, %s187
    %p196 = scmp.eq.s32.totalorder %s29, 0
    %p197 = por %p195, %p196
    %p198 = scmp.ne.s32.totalorder %s186, %s187
    %p199 = scmp.eq.s32.totalorder %s30, 1
    %p200 = por %p198, %p199
    %p202 = scmp.ne.s32.totalorder %s187, %s201
    %p203 = scmp.eq.s32.totalorder %s30, 0
    %p204 = por %p202, %p203
    %s206 = sadd.s32 %s205, 1
    %p209 = scmp.eq.s32.totalorder %s24, 1
    %p210 = scmp.ne.s32.totalorder %s205, %s207
    %p211 = scmp.eq.s32.totalorder %s24, 0
    %p212 = por %p210, %p211
    %p213 = scmp.ne.s32.totalorder %s205, %s207
    %p214 = scmp.eq.s32.totalorder %s29, 1
    %p215 = por %p213, %p214
    %p216 = scmp.ne.s32.totalorder %s207, %s208
    %p217 = scmp.eq.s32.totalorder %s29, 0
    %p218 = por %p216, %p217
    %p219 = scmp.ne.s32.totalorder %s207, %s208
    %p220 = scmp.eq.s32.totalorder %s30, 1
    %p221 = por %p219, %p220
    %p223 = scmp.ne.s32.totalorder %s208, %s222
    %p224 = scmp.eq.s32.totalorder %s30, 0
    %p225 = por %p223, %p224
    %s226 = ssub.s32 %s24, %s31
    %p227 = scmp.eq.s32.totalorder %s226, 0
    %s229 = sadd.s32 %s228, 1
    %s230 = scalar_select %p227, %s228, %s229
    %p233 = pneg %p227
    %p234 = scmp.eq.s32.totalorder %s24, 1
    %p235 = por %p233, %p234
    %p236 = scmp.ne.s32.totalorder %s228, %s231
    %p237 = scmp.eq.s32.totalorder %s24, 0
    %p238 = por %p236, %p237
    %p239 = scmp.ne.s32.totalorder %s228, %s231
    %p240 = scmp.eq.s32.totalorder %s29, 1
    %p241 = por %p239, %p240
    %p242 = scmp.ne.s32.totalorder %s231, %s232
    %p243 = scmp.eq.s32.totalorder %s29, 0
    %p244 = por %p242, %p243
    %p245 = scmp.ne.s32.totalorder %s231, %s232
    %p246 = scmp.eq.s32.totalorder %s30, 1
    %p247 = por %p245, %p246
    %p249 = scmp.ne.s32.totalorder %s232, %s248
    %p250 = scmp.eq.s32.totalorder %s30, 0
    %p251 = por %p249, %p250
    %p252 = scmp.le.s32.totalorder 1, %s24
    %p253 = scmp.lt.s32.totalorder %s24, 3
    %p254 = pnand %p252, %p253
    %p255 = pneg %p254
    // Predicated region
    $region9: #{decoder_s2d.1} parent=5 // pred_check
      _
    $region10: #{decoder_s2d.1} parent=5 // pred_check_branch
      %257 = sbr.rel (%p254) target = $region12
    $region11: #{decoder_s2d.1} parent=5 // pred_region
      %s258 = ssub.s32 %s24, 1
      // Predicated region
      $region13: #{decoder_s2d.1} parent=11 // pred_check
        %p259 = pneg %p71
      $region14: #{decoder_s2d.1} parent=11 // pred_check_branch
        %261 = sbr.rel (%p259) target = $region16
      $region15: #{decoder_s2d.1} parent=11 // pred_region
        _
      $region16: #{decoder_s2d.1} parent=11 // pred_fallthru
        _
      // Predicated region
      $region17: #{decoder_s2d.1} parent=11 // pred_check
        %p262 = pneg %p92
      $region18: #{decoder_s2d.1} parent=11 // pred_check_branch
        %264 = sbr.rel (%p262) target = $region20
      $region19: #{decoder_s2d.1} parent=11 // pred_region
        _
      $region20: #{decoder_s2d.1} parent=11 // pred_fallthru
        _
      // Predicated region
      $region21: #{decoder_s2d.1} parent=11 // pred_check
        %p265 = pneg %p113
      $region22: #{decoder_s2d.1} parent=11 // pred_check_branch
        %267 = sbr.rel (%p265) target = $region24
      $region23: #{decoder_s2d.1} parent=11 // pred_region
        _
      $region24: #{decoder_s2d.1} parent=11 // pred_fallthru
        _
      // Predicated region
      $region25: #{decoder_s2d.1} parent=11 // pred_check
        %p268 = pneg %p134
      $region26: #{decoder_s2d.1} parent=11 // pred_check_branch
        %270 = sbr.rel (%p268) target = $region28
      $region27: #{decoder_s2d.1} parent=11 // pred_region
        _
      $region28: #{decoder_s2d.1} parent=11 // pred_fallthru
        _
      // Predicated region
      $region29: #{decoder_s2d.1} parent=11 // pred_check
        %p271 = pneg %p155
      $region30: #{decoder_s2d.1} parent=11 // pred_check_branch
        %273 = sbr.rel (%p271) target = $region32
      $region31: #{decoder_s2d.1} parent=11 // pred_region
        _
      $region32: #{decoder_s2d.1} parent=11 // pred_fallthru
        _
      // Predicated region
      $region33: #{decoder_s2d.1} parent=11 // pred_check
        %p274 = pneg %p176
      $region34: #{decoder_s2d.1} parent=11 // pred_check_branch
        %276 = sbr.rel (%p274) target = $region36
      $region35: #{decoder_s2d.1} parent=11 // pred_region
        _
      $region36: #{decoder_s2d.1} parent=11 // pred_fallthru
        _
      // Predicated region
      $region37: #{decoder_s2d.1} parent=11 // pred_check
        %p277 = pneg %p197
      $region38: #{decoder_s2d.1} parent=11 // pred_check_branch
        %279 = sbr.rel (%p277) target = $region40
      $region39: #{decoder_s2d.1} parent=11 // pred_region
        _
      $region40: #{decoder_s2d.1} parent=11 // pred_fallthru
        _
      // Predicated region
      $region41: #{decoder_s2d.1} parent=11 // pred_check
        %p280 = pneg %p218
      $region42: #{decoder_s2d.1} parent=11 // pred_check_branch
        %282 = sbr.rel (%p280) target = $region44
      $region43: #{decoder_s2d.1} parent=11 // pred_region
        _
      $region44: #{decoder_s2d.1} parent=11 // pred_fallthru
        _
    $region12: #{decoder_s2d.1} parent=5 // pred_fallthru
      _
    %p283 = scmp.lt.s32.totalorder %s24, 2
    // Predicated region
    $region45: #{decoder_s2d.1} parent=5 // pred_check
      %p284 = pneg %p283
    $region46: #{decoder_s2d.1} parent=5 // pred_check_branch
      %286 = sbr.rel (%p284) target = $region48
    $region47: #{decoder_s2d.1} parent=5 // pred_region
      // Predicated region
      $region49: #{decoder_s2d.1} parent=47 // pred_check
        %p287 = pneg %p44
      $region50: #{decoder_s2d.1} parent=47 // pred_check_branch
        %289 = sbr.rel (%p287) target = $region52
      $region51: #{decoder_s2d.1} parent=47 // pred_region
        %s290 = smul.u32 16, %s24
        %p291 = scmp.lt.s32.totalorder %s290, 31
        %s292 = scalar_select %p291, %s290, 31
        %s293 = smul.addr %s292, 8
        %s294 = scalar_lea.vmem %s1, %s293
        %s295 = smul.u32 16, %s24
      $region52: #{decoder_s2d.1} parent=47 // pred_fallthru
        _
    $region48: #{decoder_s2d.1} parent=5 // pred_fallthru
      _
    %p296 = scmp.le.s32.totalorder 1, %s24
    %p297 = scmp.lt.s32.totalorder %s24, 3
    %p298 = pnand %p296, %p297
    %p299 = pneg %p298
    // Predicated region
    $region53: #{decoder_s2d.1} parent=5 // pred_check
      _
    $region54: #{decoder_s2d.1} parent=5 // pred_check_branch
      %301 = sbr.rel (%p298) target = $region56
    $region55: #{decoder_s2d.1} parent=5 // pred_region
      %s302 = ssub.s32 %s24, 1
      %s303 = smul.u32 16, %s29
      %p304 = scmp.lt.s32.totalorder %s303, 31
      %s305 = scalar_select %p304, %s303, 31
      %s306 = smul.addr %s305, 8
      %s307 = scalar_lea.vmem %s1, %s306
      %p308 = pneg %p50
      %p309 = pneg %p47
      %p310 = pneg %p71
      %p311 = pneg %p68
      %p312 = pneg %p92
      %p313 = pneg %p89
      %p314 = pneg %p113
      %p315 = pneg %p110
      %p316 = pneg %p134
      %p317 = pneg %p131
      %p318 = pneg %p155
      %p319 = pneg %p152
      %p320 = pneg %p176
      %p321 = pneg %p173
      %p322 = pneg %p197
      %p323 = pneg %p194
      %p324 = pneg %p218
      %p325 = pneg %p215
      %p326 = pneg %p244
      %p327 = pneg %p241
      %s328 = smul.u32 16, %s29
      %p329 = scmp.lt.s32.totalorder %s328, 31
      %s330 = scalar_select %p329, %s328, 31
      %s331 = smul.addr %s330, 8
      %s332 = scalar_lea.vmem %s10, %s331
      %s333 = smul.u32 16, %s29
      %p334 = scmp.lt.s32.totalorder %s333, 31
      %s335 = scalar_select %p334, %s333, 31
      %s336 = smul.addr %s335, 8
      %s337 = scalar_lea.vmem %s1, %s336
      %s338 = smul.u32 16, %s29
      %s339 = smul.u32 16, %s29
      %p340 = scmp.lt.s32.totalorder %s339, 31
      %s341 = scalar_select %p340, %s339, 31
      %s342 = smul.addr %s341, 8
      %s343 = scalar_lea.vmem %s10, %s342
      %s344 = smul.u32 16, %s29
      %v346 = vld [vmem:[%s337] sm:$0xff]
      %v347 = vld [vmem:[%s337 + $0x8] sm:$0xff]
      %v348 = vld [vmem:[%s337 + $0x10] sm:$0xff]
      %v349 = vld [vmem:[%s337 + $0x18] sm:$0xff]
      %v350 = vld [vmem:[%s337 + $0x20] sm:$0xff]
      %v351 = vld [vmem:[%s337 + $0x28] sm:$0xff]
      %v352 = vld [vmem:[%s337 + $0x30] sm:$0xff]
      %v353 = vld [vmem:[%s337 + $0x38] sm:$0xff]
      %v354 = vld [vmem:[%s337 + $0x40] sm:$0xff]
      %v355 = vld [vmem:[%s337 + $0x48] sm:$0xff]
      %v356 = vld [vmem:[%s337 + $0x50] sm:$0xff]
      %v357 = vld [vmem:[%s337 + $0x58] sm:$0xff]
      %v358 = vld [vmem:[%s337 + $0x60] sm:$0xff]
      %v359 = vld [vmem:[%s337 + $0x68] sm:$0xff]
      %v360 = vld [vmem:[%s337 + $0x70] sm:$0xff]
      %v361 = vld [vmem:[%s337 + $0x78] sm:$0xff]
      %v362 = vpack.c.bf16 %v347, %v346
      %v363 = vpack.c.bf16 %v349, %v348
      %v364 = vpack.c.bf16 %v351, %v350
      %v365 = vpack.c.bf16 %v353, %v352
      %v366 = vpack.c.bf16 %v355, %v354
      %v367 = vpack.c.bf16 %v357, %v356
      %v368 = vpack.c.bf16 %v359, %v358
      %v369 = vpack.c.bf16 %v361, %v360
      %v370 = vld [vmem:[%s2] sm:$0xf]
      %v371 = vld [vmem:[%s2 + $0x4] sm:$0xf]
      %v372 = vld [vmem:[%s2 + $0x8] sm:$0xf]
      %v373 = vld [vmem:[%s2 + $0xc] sm:$0xf]
      %v378 = vunpack.c.l.b16 %v370
      %v379 = vunpack.c.l.b16 %v371
      %v380 = vunpack.c.l.b16 %v372
      %v381 = vunpack.c.l.b16 %v373
      %v382 = vpack.c.b16 %v379, %v378
      %v383 = vpack.c.b16 %v381, %v380
      %vm386 = vcmask 261120
      %v388 = vsel %vm386, %v362, 0
      %v391 = vsel %vm386, %v363, 0
      %v394 = vsel %vm386, %v364, 0
      %v397 = vsel %vm386, %v365, 0
      %v400 = vsel %vm386, %v366, 0
      %v403 = vsel %vm386, %v367, 0
      %v406 = vsel %vm386, %v368, 0
      %v409 = vsel %vm386, %v369, 0
      %411 = vmatpush.bf16.msra.mxu0 0
      %412 = vmatpush.bf16.msra.mxu0 0
      %413 = vmatpush.bf16.msra.mxu0 0
      %414 = vmatpush.bf16.msra.mxu0 0
      %415 = vmatpush.bf16.msra.mxu0 0
      %416 = vmatpush.bf16.msra.mxu0 0
      %417 = vmatpush.bf16.msra.mxu0 %v383
      %418 = vmatpush.bf16.msra.mxu0 %v382
      %419 = vmatmul.bf16.gmra.mxu0 %v388
      %v420 = vpop.f32.mrf.mxu0
      %v421 = vadd.f32 0.0, %v420
      %v422 = vpop.f32.mrf.mxu0
      %v423 = vadd.f32 0.0, %v422
      %424 = vmatmul.bf16.gmra.mxu0 %v391
      %v425 = vpop.f32.mrf.mxu0
      %v426 = vadd.f32 0.0, %v425
      %v427 = vpop.f32.mrf.mxu0
      %v428 = vadd.f32 0.0, %v427
      %429 = vmatmul.bf16.gmra.mxu0 %v394
      %v430 = vpop.f32.mrf.mxu0
      %v431 = vadd.f32 0.0, %v430
      %v432 = vpop.f32.mrf.mxu0
      %v433 = vadd.f32 0.0, %v432
      %434 = vmatmul.bf16.gmra.mxu0 %v397
      %v435 = vpop.f32.mrf.mxu0
      %v436 = vadd.f32 0.0, %v435
      %v437 = vpop.f32.mrf.mxu0
      %v438 = vadd.f32 0.0, %v437
      %439 = vmatmul.bf16.gmra.mxu0 %v400
      %v440 = vpop.f32.mrf.mxu0
      %v441 = vadd.f32 0.0, %v440
      %v442 = vpop.f32.mrf.mxu0
      %v443 = vadd.f32 0.0, %v442
      %444 = vmatmul.bf16.gmra.mxu0 %v403
      %v445 = vpop.f32.mrf.mxu0
      %v446 = vadd.f32 0.0, %v445
      %v447 = vpop.f32.mrf.mxu0
      %v448 = vadd.f32 0.0, %v447
      %449 = vmatmul.bf16.gmra.mxu0 %v406
      %v450 = vpop.f32.mrf.mxu0
      %v451 = vadd.f32 0.0, %v450
      %v452 = vpop.f32.mrf.mxu0
      %v453 = vadd.f32 0.0, %v452
      %454 = vmatmul.bf16.gmra.mxu0 %v409
      %v455 = vpop.f32.mrf.mxu0
      %v456 = vadd.f32 0.0, %v455
      %v457 = vpop.f32.mrf.mxu0
      %v458 = vadd.f32 0.0, %v457
      %459 = vdwg.mxu0
      %v460 = vpack.c.bf16 %v421, %v421
      %v461 = vpack.c.bf16 %v423, %v423
      %v462 = vpack.c.bf16 %v426, %v426
      %v463 = vpack.c.bf16 %v428, %v428
      %v464 = vpack.c.bf16 %v431, %v431
      %v465 = vpack.c.bf16 %v433, %v433
      %v466 = vpack.c.bf16 %v436, %v436
      %v467 = vpack.c.bf16 %v438, %v438
      %v468 = vpack.c.bf16 %v441, %v441
      %v469 = vpack.c.bf16 %v443, %v443
      %v470 = vpack.c.bf16 %v446, %v446
      %v471 = vpack.c.bf16 %v448, %v448
      %v472 = vpack.c.bf16 %v451, %v451
      %v473 = vpack.c.bf16 %v453, %v453
      %v474 = vpack.c.bf16 %v456, %v456
      %v475 = vpack.c.bf16 %v458, %v458
      %v476 = vld [vmem:[%s3] sm:$0x1]
      %v478 = vpack.i.b16 %v476, %v476
      %v480 = vperm.slane %v478, 0
      %v481 = vunpack.c.l.bf16 %v460
      %v482 = vunpack.c.l.bf16 %v461
      %v483 = vunpack.c.l.bf16 %v462
      %v484 = vunpack.c.l.bf16 %v463
      %v485 = vunpack.c.l.bf16 %v464
      %v486 = vunpack.c.l.bf16 %v465
      %v487 = vunpack.c.l.bf16 %v466
      %v488 = vunpack.c.l.bf16 %v467
      %v489 = vunpack.c.l.bf16 %v468
      %v490 = vunpack.c.l.bf16 %v469
      %v491 = vunpack.c.l.bf16 %v470
      %v492 = vunpack.c.l.bf16 %v471
      %v493 = vunpack.c.l.bf16 %v472
      %v494 = vunpack.c.l.bf16 %v473
      %v495 = vunpack.c.l.bf16 %v474
      %v496 = vunpack.c.l.bf16 %v475
      %v497 = vunpack.c.l.bf16 %v480
      %v498 = vadd.f32 %v481, %v497
      %v499 = vadd.f32 %v482, %v497
      %v500 = vadd.f32 %v483, %v497
      %v501 = vadd.f32 %v484, %v497
      %v502 = vadd.f32 %v485, %v497
      %v503 = vadd.f32 %v486, %v497
      %v504 = vadd.f32 %v487, %v497
      %v505 = vadd.f32 %v488, %v497
      %v506 = vadd.f32 %v489, %v497
      %v507 = vadd.f32 %v490, %v497
      %v508 = vadd.f32 %v491, %v497
      %v509 = vadd.f32 %v492, %v497
      %v510 = vadd.f32 %v493, %v497
      %v511 = vadd.f32 %v494, %v497
      %v512 = vadd.f32 %v495, %v497
      %v513 = vadd.f32 %v496, %v497
      %v514 = vpack.c.bf16 %v498, %v498
      %v515 = vpack.c.bf16 %v499, %v499
      %v516 = vpack.c.bf16 %v500, %v500
      %v517 = vpack.c.bf16 %v501, %v501
      %v518 = vpack.c.bf16 %v502, %v502
      %v519 = vpack.c.bf16 %v503, %v503
      %v520 = vpack.c.bf16 %v504, %v504
      %v521 = vpack.c.bf16 %v505, %v505
      %v522 = vpack.c.bf16 %v506, %v506
      %v523 = vpack.c.bf16 %v507, %v507
      %v524 = vpack.c.bf16 %v508, %v508
      %v525 = vpack.c.bf16 %v509, %v509
      %v526 = vpack.c.bf16 %v510, %v510
      %v527 = vpack.c.bf16 %v511, %v511
      %v528 = vpack.c.bf16 %v512, %v512
      %v529 = vpack.c.bf16 %v513, %v513
      %s530 = sld [smem:[#allocation3]]
      %v531 = vstv %s530
      %v532 = vpack.c.bf16 %v531, %v531
      %v533 = vunpack.c.l.bf16 %v514
      %v534 = vunpack.c.l.bf16 %v515
      %v535 = vunpack.c.l.bf16 %v516
      %v536 = vunpack.c.l.bf16 %v517
      %v537 = vunpack.c.l.bf16 %v518
      %v538 = vunpack.c.l.bf16 %v519
      %v539 = vunpack.c.l.bf16 %v520
      %v540 = vunpack.c.l.bf16 %v521
      %v541 = vunpack.c.l.bf16 %v522
      %v542 = vunpack.c.l.bf16 %v523
      %v543 = vunpack.c.l.bf16 %v524
      %v544 = vunpack.c.l.bf16 %v525
      %v545 = vunpack.c.l.bf16 %v526
      %v546 = vunpack.c.l.bf16 %v527
      %v547 = vunpack.c.l.bf16 %v528
      %v548 = vunpack.c.l.bf16 %v529
      %vm549 = vcmp.gt.f32.partialorder %v533, 0.0
      %vm550 = vcmp.gt.f32.partialorder %v534, 0.0
      %vm551 = vcmp.gt.f32.partialorder %v535, 0.0
      %vm552 = vcmp.gt.f32.partialorder %v536, 0.0
      %vm553 = vcmp.gt.f32.partialorder %v537, 0.0
      %vm554 = vcmp.gt.f32.partialorder %v538, 0.0
      %vm555 = vcmp.gt.f32.partialorder %v539, 0.0
      %vm556 = vcmp.gt.f32.partialorder %v540, 0.0
      %vm557 = vcmp.gt.f32.partialorder %v541, 0.0
      %vm558 = vcmp.gt.f32.partialorder %v542, 0.0
      %vm559 = vcmp.gt.f32.partialorder %v543, 0.0
      %vm560 = vcmp.gt.f32.partialorder %v544, 0.0
      %vm561 = vcmp.gt.f32.partialorder %v545, 0.0
      %vm562 = vcmp.gt.f32.partialorder %v546, 0.0
      %vm563 = vcmp.gt.f32.partialorder %v547, 0.0
      %vm564 = vcmp.gt.f32.partialorder %v548, 0.0
      %v565 = vunpack.c.l.bf16 %v532
      %v566 = vmul.f32 %v565, %v533
      %v567 = vmul.f32 %v565, %v534
      %v568 = vmul.f32 %v565, %v535
      %v569 = vmul.f32 %v565, %v536
      %v570 = vmul.f32 %v565, %v537
      %v571 = vmul.f32 %v565, %v538
      %v572 = vmul.f32 %v565, %v539
      %v573 = vmul.f32 %v565, %v540
      %v574 = vmul.f32 %v565, %v541
      %v575 = vmul.f32 %v565, %v542
      %v576 = vmul.f32 %v565, %v543
      %v577 = vmul.f32 %v565, %v544
      %v578 = vmul.f32 %v565, %v545
      %v579 = vmul.f32 %v565, %v546
      %v580 = vmul.f32 %v565, %v547
      %v581 = vmul.f32 %v565, %v548
      %v582 = vpack.c.bf16 %v566, %v566
      %v583 = vpack.c.bf16 %v567, %v567
      %v584 = vpack.c.bf16 %v568, %v568
      %v585 = vpack.c.bf16 %v569, %v569
      %v586 = vpack.c.bf16 %v570, %v570
      %v587 = vpack.c.bf16 %v571, %v571
      %v588 = vpack.c.bf16 %v572, %v572
      %v589 = vpack.c.bf16 %v573, %v573
      %v590 = vpack.c.bf16 %v574, %v574
      %v591 = vpack.c.bf16 %v575, %v575
      %v592 = vpack.c.bf16 %v576, %v576
      %v593 = vpack.c.bf16 %v577, %v577
      %v594 = vpack.c.bf16 %v578, %v578
      %v595 = vpack.c.bf16 %v579, %v579
      %v596 = vpack.c.bf16 %v580, %v580
      %v597 = vpack.c.bf16 %v581, %v581
      %vm598 = vmpackc.low %vm549, %vm549
      %vm599 = vmpackc.low %vm550, %vm550
      %vm600 = vmpackc.low %vm551, %vm551
      %vm601 = vmpackc.low %vm552, %vm552
      %vm602 = vmpackc.low %vm553, %vm553
      %vm603 = vmpackc.low %vm554, %vm554
      %vm604 = vmpackc.low %vm555, %vm555
      %vm605 = vmpackc.low %vm556, %vm556
      %vm606 = vmpackc.low %vm557, %vm557
      %vm607 = vmpackc.low %vm558, %vm558
      %vm608 = vmpackc.low %vm559, %vm559
      %vm609 = vmpackc.low %vm560, %vm560
      %vm610 = vmpackc.low %vm561, %vm561
      %vm611 = vmpackc.low %vm562, %vm562
      %vm612 = vmpackc.low %vm563, %vm563
      %vm613 = vmpackc.low %vm564, %vm564
      %v614 = vsel %vm598, %v514, %v582
      %v615 = vsel %vm599, %v515, %v583
      %v616 = vsel %vm600, %v516, %v584
      %v617 = vsel %vm601, %v517, %v585
      %v618 = vsel %vm602, %v518, %v586
      %v619 = vsel %vm603, %v519, %v587
      %v620 = vsel %vm604, %v520, %v588
      %v621 = vsel %vm605, %v521, %v589
      %v622 = vsel %vm606, %v522, %v590
      %v623 = vsel %vm607, %v523, %v591
      %v624 = vsel %vm608, %v524, %v592
      %v625 = vsel %vm609, %v525, %v593
      %v626 = vsel %vm610, %v526, %v594
      %v627 = vsel %vm611, %v527, %v595
      %v628 = vsel %vm612, %v528, %v596
      %v629 = vsel %vm613, %v529, %v597
      %v630 = vld [vmem:[%s4] sm:$0xff]
      %v631 = vld [vmem:[%s4 + $0x8] sm:$0xff]
      %v632 = vld [vmem:[%s4 + $0x10] sm:$0xff]
      %v633 = vld [vmem:[%s4 + $0x18] sm:$0xff]
      %v634 = vld [vmem:[%s4 + $0x20] sm:$0xff]
      %v635 = vld [vmem:[%s4 + $0x28] sm:$0xff]
      %v636 = vld [vmem:[%s4 + $0x30] sm:$0xff]
      %v637 = vld [vmem:[%s4 + $0x38] sm:$0xff]
      %v638 = vld [vmem:[%s4 + $0x40] sm:$0xff]
      %v639 = vld [vmem:[%s4 + $0x48] sm:$0xff]
      %v640 = vld [vmem:[%s4 + $0x50] sm:$0xff]
      %v641 = vld [vmem:[%s4 + $0x58] sm:$0xff]
      %v642 = vld [vmem:[%s4 + $0x60] sm:$0xff]
      %v643 = vld [vmem:[%s4 + $0x68] sm:$0xff]
      %v644 = vld [vmem:[%s4 + $0x70] sm:$0xff]
      %v645 = vld [vmem:[%s4 + $0x78] sm:$0xff]
      %v662 = vunpack.c.l.b16 %v614
      %v663 = vunpack.c.l.b16 %v615
      %v664 = vunpack.c.l.b16 %v616
      %v665 = vunpack.c.l.b16 %v617
      %v666 = vunpack.c.l.b16 %v618
      %v667 = vunpack.c.l.b16 %v619
      %v668 = vunpack.c.l.b16 %v620
      %v669 = vunpack.c.l.b16 %v621
      %v670 = vunpack.c.l.b16 %v622
      %v671 = vunpack.c.l.b16 %v623
      %v672 = vunpack.c.l.b16 %v624
      %v673 = vunpack.c.l.b16 %v625
      %v674 = vunpack.c.l.b16 %v626
      %v675 = vunpack.c.l.b16 %v627
      %v676 = vunpack.c.l.b16 %v628
      %v677 = vunpack.c.l.b16 %v629
      %v678 = vpack.c.b16 %v663, %v662
      %v679 = vpack.c.b16 %v665, %v664
      %v680 = vpack.c.b16 %v667, %v666
      %v681 = vpack.c.b16 %v669, %v668
      %v682 = vpack.c.b16 %v671, %v670
      %v683 = vpack.c.b16 %v673, %v672
      %v684 = vpack.c.b16 %v675, %v674
      %v685 = vpack.c.b16 %v677, %v676
      %v710 = vunpack.c.l.b16 %v630
      %v711 = vunpack.c.h.b16 %v630
      %v712 = vunpack.c.l.b16 %v631
      %v713 = vunpack.c.h.b16 %v631
      %v714 = vunpack.c.l.b16 %v632
      %v715 = vunpack.c.h.b16 %v632
      %v716 = vunpack.c.l.b16 %v633
      %v717 = vunpack.c.h.b16 %v633
      %v718 = vunpack.c.l.b16 %v634
      %v719 = vunpack.c.h.b16 %v634
      %v720 = vunpack.c.l.b16 %v635
      %v721 = vunpack.c.h.b16 %v635
      %v722 = vunpack.c.l.b16 %v636
      %v723 = vunpack.c.h.b16 %v636
      %v724 = vunpack.c.l.b16 %v637
      %v725 = vunpack.c.h.b16 %v637
      %v726 = vunpack.c.l.b16 %v638
      %v727 = vunpack.c.h.b16 %v638
      %v728 = vunpack.c.l.b16 %v639
      %v729 = vunpack.c.h.b16 %v639
      %v730 = vunpack.c.l.b16 %v640
      %v731 = vunpack.c.h.b16 %v640
      %v732 = vunpack.c.l.b16 %v641
      %v733 = vunpack.c.h.b16 %v641
      %v734 = vunpack.c.l.b16 %v642
      %v735 = vunpack.c.h.b16 %v642
      %v736 = vunpack.c.l.b16 %v643
      %v737 = vunpack.c.h.b16 %v643
      %v738 = vunpack.c.l.b16 %v644
      %v739 = vunpack.c.h.b16 %v644
      %v740 = vunpack.c.l.b16 %v645
      %v741 = vunpack.c.h.b16 %v645
      %v742 = vpack.c.b16 %v712, %v710
      %v743 = vpack.c.b16 %v713, %v711
      %v744 = vpack.c.b16 %v716, %v714
      %v745 = vpack.c.b16 %v717, %v715
      %v746 = vpack.c.b16 %v720, %v718
      %v747 = vpack.c.b16 %v721, %v719
      %v748 = vpack.c.b16 %v724, %v722
      %v749 = vpack.c.b16 %v725, %v723
      %v750 = vpack.c.b16 %v728, %v726
      %v751 = vpack.c.b16 %v729, %v727
      %v752 = vpack.c.b16 %v732, %v730
      %v753 = vpack.c.b16 %v733, %v731
      %v754 = vpack.c.b16 %v736, %v734
      %v755 = vpack.c.b16 %v737, %v735
      %v756 = vpack.c.b16 %v740, %v738
      %v757 = vpack.c.b16 %v741, %v739
      %774 = vmatpush.bf16.msra.mxu0 %v756
      %775 = vmatpush.bf16.msra.mxu0 %v754
      %776 = vmatpush.bf16.msra.mxu0 %v752
      %777 = vmatpush.bf16.msra.mxu0 %v750
      %778 = vmatpush.bf16.msra.mxu0 %v748
      %779 = vmatpush.bf16.msra.mxu0 %v746
      %780 = vmatpush.bf16.msra.mxu0 %v744
      %781 = vmatpush.bf16.msra.mxu0 %v742
      %782 = vmatmul.bf16.gmra.mxu0 %v678
      %v783 = vpop.f32.mrf.mxu0
      %v784 = vadd.f32 0.0, %v783
      %v785 = vpop.f32.mrf.mxu0
      %v786 = vadd.f32 0.0, %v785
      %787 = vmatmul.bf16.gmra.mxu0 %v679
      %v788 = vpop.f32.mrf.mxu0
      %v789 = vadd.f32 0.0, %v788
      %v790 = vpop.f32.mrf.mxu0
      %v791 = vadd.f32 0.0, %v790
      %792 = vmatmul.bf16.gmra.mxu0 %v680
      %v793 = vpop.f32.mrf.mxu0
      %v794 = vadd.f32 0.0, %v793
      %v795 = vpop.f32.mrf.mxu0
      %v796 = vadd.f32 0.0, %v795
      %797 = vmatmul.bf16.gmra.mxu0 %v681
      %v798 = vpop.f32.mrf.mxu0
      %v799 = vadd.f32 0.0, %v798
      %v800 = vpop.f32.mrf.mxu0
      %v801 = vadd.f32 0.0, %v800
      %802 = vmatmul.bf16.gmra.mxu0 %v682
      %v803 = vpop.f32.mrf.mxu0
      %v804 = vadd.f32 0.0, %v803
      %v805 = vpop.f32.mrf.mxu0
      %v806 = vadd.f32 0.0, %v805
      %807 = vmatmul.bf16.gmra.mxu0 %v683
      %v808 = vpop.f32.mrf.mxu0
      %v809 = vadd.f32 0.0, %v808
      %v810 = vpop.f32.mrf.mxu0
      %v811 = vadd.f32 0.0, %v810
      %812 = vmatmul.bf16.gmra.mxu0 %v684
      %v813 = vpop.f32.mrf.mxu0
      %v814 = vadd.f32 0.0, %v813
      %v815 = vpop.f32.mrf.mxu0
      %v816 = vadd.f32 0.0, %v815
      %817 = vmatmul.bf16.gmra.mxu0 %v685
      %v818 = vpop.f32.mrf.mxu0
      %v819 = vadd.f32 0.0, %v818
      %v820 = vpop.f32.mrf.mxu0
      %v821 = vadd.f32 0.0, %v820
      %822 = vdwg.mxu0
      %823 = vmatpush.bf16.msra.mxu0 %v757
      %824 = vmatpush.bf16.msra.mxu0 %v755
      %825 = vmatpush.bf16.msra.mxu0 %v753
      %826 = vmatpush.bf16.msra.mxu0 %v751
      %827 = vmatpush.bf16.msra.mxu0 %v749
      %828 = vmatpush.bf16.msra.mxu0 %v747
      %829 = vmatpush.bf16.msra.mxu0 %v745
      %830 = vmatpush.bf16.msra.mxu0 %v743
      %831 = vmatmul.bf16.gmra.mxu0 %v678
      %v832 = vpop.f32.mrf.mxu0
      %v833 = vadd.f32 0.0, %v832
      %v834 = vpop.f32.mrf.mxu0
      %v835 = vadd.f32 0.0, %v834
      %836 = vmatmul.bf16.gmra.mxu0 %v679
      %v837 = vpop.f32.mrf.mxu0
      %v838 = vadd.f32 0.0, %v837
      %v839 = vpop.f32.mrf.mxu0
      %v840 = vadd.f32 0.0, %v839
      %841 = vmatmul.bf16.gmra.mxu0 %v680
      %v842 = vpop.f32.mrf.mxu0
      %v843 = vadd.f32 0.0, %v842
      %v844 = vpop.f32.mrf.mxu0
      %v845 = vadd.f32 0.0, %v844
      %846 = vmatmul.bf16.gmra.mxu0 %v681
      %v847 = vpop.f32.mrf.mxu0
      %v848 = vadd.f32 0.0, %v847
      %v849 = vpop.f32.mrf.mxu0
      %v850 = vadd.f32 0.0, %v849
      %851 = vmatmul.bf16.gmra.mxu0 %v682
      %v852 = vpop.f32.mrf.mxu0
      %v853 = vadd.f32 0.0, %v852
      %v854 = vpop.f32.mrf.mxu0
      %v855 = vadd.f32 0.0, %v854
      %856 = vmatmul.bf16.gmra.mxu0 %v683
      %v857 = vpop.f32.mrf.mxu0
      %v858 = vadd.f32 0.0, %v857
      %v859 = vpop.f32.mrf.mxu0
      %v860 = vadd.f32 0.0, %v859
      %861 = vmatmul.bf16.gmra.mxu0 %v684
      %v862 = vpop.f32.mrf.mxu0
      %v863 = vadd.f32 0.0, %v862
      %v864 = vpop.f32.mrf.mxu0
      %v865 = vadd.f32 0.0, %v864
      %866 = vmatmul.bf16.gmra.mxu0 %v685
      %v867 = vpop.f32.mrf.mxu0
      %v868 = vadd.f32 0.0, %v867
      %v869 = vpop.f32.mrf.mxu0
      %v870 = vadd.f32 0.0, %v869
      %871 = vdwg.mxu0
      %v872 = vpack.c.bf16 %v833, %v784
      %v873 = vpack.c.bf16 %v835, %v786
      %v874 = vpack.c.bf16 %v838, %v789
      %v875 = vpack.c.bf16 %v840, %v791
      %v876 = vpack.c.bf16 %v843, %v794
      %v877 = vpack.c.bf16 %v845, %v796
      %v878 = vpack.c.bf16 %v848, %v799
      %v879 = vpack.c.bf16 %v850, %v801
      %v880 = vpack.c.bf16 %v853, %v804
      %v881 = vpack.c.bf16 %v855, %v806
      %v882 = vpack.c.bf16 %v858, %v809
      %v883 = vpack.c.bf16 %v860, %v811
      %v884 = vpack.c.bf16 %v863, %v814
      %v885 = vpack.c.bf16 %v865, %v816
      %v886 = vpack.c.bf16 %v868, %v819
      %v887 = vpack.c.bf16 %v870, %v821
      %v888 = vld [vmem:[%s5] sm:$0x3]
      %890 = vst [vmem:[#allocation1] ss:$9 sm:$0xff] %v888
      %v891 = vld [vmem:[#allocation1] sm:$0xff]
      %v892 = vld [vmem:[#allocation1 + $0x9] sm:$0xff]
      %v893 = vpack.i.b16 %v891, %v891
      %v895 = vperm.slane %v893, 0
      %v896 = vpack.i.b16 %v892, %v892
      %v898 = vperm.slane %v896, 0
      %v899 = vunpack.c.l.bf16 %v872
      %v900 = vunpack.c.h.bf16 %v872
      %v901 = vunpack.c.l.bf16 %v873
      %v902 = vunpack.c.h.bf16 %v873
      %v903 = vunpack.c.l.bf16 %v874
      %v904 = vunpack.c.h.bf16 %v874
      %v905 = vunpack.c.l.bf16 %v875
      %v906 = vunpack.c.h.bf16 %v875
      %v907 = vunpack.c.l.bf16 %v876
      %v908 = vunpack.c.h.bf16 %v876
      %v909 = vunpack.c.l.bf16 %v877
      %v910 = vunpack.c.h.bf16 %v877
      %v911 = vunpack.c.l.bf16 %v878
      %v912 = vunpack.c.h.bf16 %v878
      %v913 = vunpack.c.l.bf16 %v879
      %v914 = vunpack.c.h.bf16 %v879
      %v915 = vunpack.c.l.bf16 %v880
      %v916 = vunpack.c.h.bf16 %v880
      %v917 = vunpack.c.l.bf16 %v881
      %v918 = vunpack.c.h.bf16 %v881
      %v919 = vunpack.c.l.bf16 %v882
      %v920 = vunpack.c.h.bf16 %v882
      %v921 = vunpack.c.l.bf16 %v883
      %v922 = vunpack.c.h.bf16 %v883
      %v923 = vunpack.c.l.bf16 %v884
      %v924 = vunpack.c.h.bf16 %v884
      %v925 = vunpack.c.l.bf16 %v885
      %v926 = vunpack.c.h.bf16 %v885
      %v927 = vunpack.c.l.bf16 %v886
      %v928 = vunpack.c.h.bf16 %v886
      %v929 = vunpack.c.l.bf16 %v887
      %v930 = vunpack.c.h.bf16 %v887
      %v931 = vunpack.c.l.bf16 %v895
      %v932 = vunpack.c.l.bf16 %v898
      %v933 = vadd.f32 %v899, %v931
      %v934 = vadd.f32 %v900, %v932
      %v935 = vadd.f32 %v901, %v931
      %v936 = vadd.f32 %v902, %v932
      %v937 = vadd.f32 %v903, %v931
      %v938 = vadd.f32 %v904, %v932
      %v939 = vadd.f32 %v905, %v931
      %v940 = vadd.f32 %v906, %v932
      %v941 = vadd.f32 %v907, %v931
      %v942 = vadd.f32 %v908, %v932
      %v943 = vadd.f32 %v909, %v931
      %v944 = vadd.f32 %v910, %v932
      %v945 = vadd.f32 %v911, %v931
      %v946 = vadd.f32 %v912, %v932
      %v947 = vadd.f32 %v913, %v931
      %v948 = vadd.f32 %v914, %v932
      %v949 = vadd.f32 %v915, %v931
      %v950 = vadd.f32 %v916, %v932
      %v951 = vadd.f32 %v917, %v931
      %v952 = vadd.f32 %v918, %v932
      %v953 = vadd.f32 %v919, %v931
      %v954 = vadd.f32 %v920, %v932
      %v955 = vadd.f32 %v921, %v931
      %v956 = vadd.f32 %v922, %v932
      %v957 = vadd.f32 %v923, %v931
      %v958 = vadd.f32 %v924, %v932
      %v959 = vadd.f32 %v925, %v931
      %v960 = vadd.f32 %v926, %v932
      %v961 = vadd.f32 %v927, %v931
      %v962 = vadd.f32 %v928, %v932
      %v963 = vadd.f32 %v929, %v931
      %v964 = vadd.f32 %v930, %v932
      %v965 = vpack.c.bf16 %v934, %v933
      %v966 = vpack.c.bf16 %v936, %v935
      %v967 = vpack.c.bf16 %v938, %v937
      %v968 = vpack.c.bf16 %v940, %v939
      %v969 = vpack.c.bf16 %v942, %v941
      %v970 = vpack.c.bf16 %v944, %v943
      %v971 = vpack.c.bf16 %v946, %v945
      %v972 = vpack.c.bf16 %v948, %v947
      %v973 = vpack.c.bf16 %v950, %v949
      %v974 = vpack.c.bf16 %v952, %v951
      %v975 = vpack.c.bf16 %v954, %v953
      %v976 = vpack.c.bf16 %v956, %v955
      %v977 = vpack.c.bf16 %v958, %v957
      %v978 = vpack.c.bf16 %v960, %v959
      %v979 = vpack.c.bf16 %v962, %v961
      %v980 = vpack.c.bf16 %v964, %v963
      %s981 = sld [smem:[#allocation3 + $0x1]]
      %v982 = vstv %s981
      %v983 = vpack.c.bf16 %v982, %v982
      %v984 = vunpack.c.l.bf16 %v965
      %v985 = vunpack.c.h.bf16 %v965
      %v986 = vunpack.c.l.bf16 %v966
      %v987 = vunpack.c.h.bf16 %v966
      %v988 = vunpack.c.l.bf16 %v967
      %v989 = vunpack.c.h.bf16 %v967
      %v990 = vunpack.c.l.bf16 %v968
      %v991 = vunpack.c.h.bf16 %v968
      %v992 = vunpack.c.l.bf16 %v969
      %v993 = vunpack.c.h.bf16 %v969
      %v994 = vunpack.c.l.bf16 %v970
      %v995 = vunpack.c.h.bf16 %v970
      %v996 = vunpack.c.l.bf16 %v971
      %v997 = vunpack.c.h.bf16 %v971
      %v998 = vunpack.c.l.bf16 %v972
      %v999 = vunpack.c.h.bf16 %v972
      %v1000 = vunpack.c.l.bf16 %v973
      %v1001 = vunpack.c.h.bf16 %v973
      %v1002 = vunpack.c.l.bf16 %v974
      %v1003 = vunpack.c.h.bf16 %v974
      %v1004 = vunpack.c.l.bf16 %v975
      %v1005 = vunpack.c.h.bf16 %v975
      %v1006 = vunpack.c.l.bf16 %v976
      %v1007 = vunpack.c.h.bf16 %v976
      %v1008 = vunpack.c.l.bf16 %v977
      %v1009 = vunpack.c.h.bf16 %v977
      %v1010 = vunpack.c.l.bf16 %v978
      %v1011 = vunpack.c.h.bf16 %v978
      %v1012 = vunpack.c.l.bf16 %v979
      %v1013 = vunpack.c.h.bf16 %v979
      %v1014 = vunpack.c.l.bf16 %v980
      %v1015 = vunpack.c.h.bf16 %v980
      %vm1016 = vcmp.gt.f32.partialorder %v984, 0.0
      %vm1017 = vcmp.gt.f32.partialorder %v985, 0.0
      %vm1018 = vcmp.gt.f32.partialorder %v986, 0.0
      %vm1019 = vcmp.gt.f32.partialorder %v987, 0.0
      %vm1020 = vcmp.gt.f32.partialorder %v988, 0.0
      %vm1021 = vcmp.gt.f32.partialorder %v989, 0.0
      %vm1022 = vcmp.gt.f32.partialorder %v990, 0.0
      %vm1023 = vcmp.gt.f32.partialorder %v991, 0.0
      %vm1024 = vcmp.gt.f32.partialorder %v992, 0.0
      %vm1025 = vcmp.gt.f32.partialorder %v993, 0.0
      %vm1026 = vcmp.gt.f32.partialorder %v994, 0.0
      %vm1027 = vcmp.gt.f32.partialorder %v995, 0.0
      %vm1028 = vcmp.gt.f32.partialorder %v996, 0.0
      %vm1029 = vcmp.gt.f32.partialorder %v997, 0.0
      %vm1030 = vcmp.gt.f32.partialorder %v998, 0.0
      %vm1031 = vcmp.gt.f32.partialorder %v999, 0.0
      %vm1032 = vcmp.gt.f32.partialorder %v1000, 0.0
      %vm1033 = vcmp.gt.f32.partialorder %v1001, 0.0
      %vm1034 = vcmp.gt.f32.partialorder %v1002, 0.0
      %vm1035 = vcmp.gt.f32.partialorder %v1003, 0.0
      %vm1036 = vcmp.gt.f32.partialorder %v1004, 0.0
      %vm1037 = vcmp.gt.f32.partialorder %v1005, 0.0
      %vm1038 = vcmp.gt.f32.partialorder %v1006, 0.0
      %vm1039 = vcmp.gt.f32.partialorder %v1007, 0.0
      %vm1040 = vcmp.gt.f32.partialorder %v1008, 0.0
      %vm1041 = vcmp.gt.f32.partialorder %v1009, 0.0
      %vm1042 = vcmp.gt.f32.partialorder %v1010, 0.0
      %vm1043 = vcmp.gt.f32.partialorder %v1011, 0.0
      %vm1044 = vcmp.gt.f32.partialorder %v1012, 0.0
      %vm1045 = vcmp.gt.f32.partialorder %v1013, 0.0
      %vm1046 = vcmp.gt.f32.partialorder %v1014, 0.0
      %vm1047 = vcmp.gt.f32.partialorder %v1015, 0.0
      %v1048 = vunpack.c.l.bf16 %v983
      %v1049 = vmul.f32 %v1048, %v984
      %v1050 = vmul.f32 %v1048, %v985
      %v1051 = vmul.f32 %v1048, %v986
      %v1052 = vmul.f32 %v1048, %v987
      %v1053 = vmul.f32 %v1048, %v988
      %v1054 = vmul.f32 %v1048, %v989
      %v1055 = vmul.f32 %v1048, %v990
      %v1056 = vmul.f32 %v1048, %v991
      %v1057 = vmul.f32 %v1048, %v992
      %v1058 = vmul.f32 %v1048, %v993
      %v1059 = vmul.f32 %v1048, %v994
      %v1060 = vmul.f32 %v1048, %v995
      %v1061 = vmul.f32 %v1048, %v996
      %v1062 = vmul.f32 %v1048, %v997
      %v1063 = vmul.f32 %v1048, %v998
      %v1064 = vmul.f32 %v1048, %v999
      %v1065 = vmul.f32 %v1048, %v1000
      %v1066 = vmul.f32 %v1048, %v1001
      %v1067 = vmul.f32 %v1048, %v1002
      %v1068 = vmul.f32 %v1048, %v1003
      %v1069 = vmul.f32 %v1048, %v1004
      %v1070 = vmul.f32 %v1048, %v1005
      %v1071 = vmul.f32 %v1048, %v1006
      %v1072 = vmul.f32 %v1048, %v1007
      %v1073 = vmul.f32 %v1048, %v1008
      %v1074 = vmul.f32 %v1048, %v1009
      %v1075 = vmul.f32 %v1048, %v1010
      %v1076 = vmul.f32 %v1048, %v1011
      %v1077 = vmul.f32 %v1048, %v1012
      %v1078 = vmul.f32 %v1048, %v1013
      %v1079 = vmul.f32 %v1048, %v1014
      %v1080 = vmul.f32 %v1048, %v1015
      %v1081 = vpack.c.bf16 %v1050, %v1049
      %v1082 = vpack.c.bf16 %v1052, %v1051
      %v1083 = vpack.c.bf16 %v1054, %v1053
      %v1084 = vpack.c.bf16 %v1056, %v1055
      %v1085 = vpack.c.bf16 %v1058, %v1057
      %v1086 = vpack.c.bf16 %v1060, %v1059
      %v1087 = vpack.c.bf16 %v1062, %v1061
      %v1088 = vpack.c.bf16 %v1064, %v1063
      %v1089 = vpack.c.bf16 %v1066, %v1065
      %v1090 = vpack.c.bf16 %v1068, %v1067
      %v1091 = vpack.c.bf16 %v1070, %v1069
      %v1092 = vpack.c.bf16 %v1072, %v1071
      %v1093 = vpack.c.bf16 %v1074, %v1073
      %v1094 = vpack.c.bf16 %v1076, %v1075
      %v1095 = vpack.c.bf16 %v1078, %v1077
      %v1096 = vpack.c.bf16 %v1080, %v1079
      %vm1097 = vmpackc.low %vm1017, %vm1016
      %vm1098 = vmpackc.low %vm1019, %vm1018
      %vm1099 = vmpackc.low %vm1021, %vm1020
      %vm1100 = vmpackc.low %vm1023, %vm1022
      %vm1101 = vmpackc.low %vm1025, %vm1024
      %vm1102 = vmpackc.low %vm1027, %vm1026
      %vm1103 = vmpackc.low %vm1029, %vm1028
      %vm1104 = vmpackc.low %vm1031, %vm1030
      %vm1105 = vmpackc.low %vm1033, %vm1032
      %vm1106 = vmpackc.low %vm1035, %vm1034
      %vm1107 = vmpackc.low %vm1037, %vm1036
      %vm1108 = vmpackc.low %vm1039, %vm1038
      %vm1109 = vmpackc.low %vm1041, %vm1040
      %vm1110 = vmpackc.low %vm1043, %vm1042
      %vm1111 = vmpackc.low %vm1045, %vm1044
      %vm1112 = vmpackc.low %vm1047, %vm1046
      %v1113 = vsel %vm1097, %v965, %v1081
      %v1114 = vsel %vm1098, %v966, %v1082
      %v1115 = vsel %vm1099, %v967, %v1083
      %v1116 = vsel %vm1100, %v968, %v1084
      %v1117 = vsel %vm1101, %v969, %v1085
      %v1118 = vsel %vm1102, %v970, %v1086
      %v1119 = vsel %vm1103, %v971, %v1087
      %v1120 = vsel %vm1104, %v972, %v1088
      %v1121 = vsel %vm1105, %v973, %v1089
      %v1122 = vsel %vm1106, %v974, %v1090
      %v1123 = vsel %vm1107, %v975, %v1091
      %v1124 = vsel %vm1108, %v976, %v1092
      %v1125 = vsel %vm1109, %v977, %v1093
      %v1126 = vsel %vm1110, %v978, %v1094
      %v1127 = vsel %vm1111, %v979, %v1095
      %v1128 = vsel %vm1112, %v980, %v1096
      %v1129 = vld [vmem:[%s6] sm:$0xff]
      %v1130 = vld [vmem:[%s6 + $0x8] sm:$0xff]
      %v1131 = vld [vmem:[%s6 + $0x10] sm:$0xff]
      %v1132 = vld [vmem:[%s6 + $0x18] sm:$0xff]
      %v1133 = vld [vmem:[%s6 + $0x20] sm:$0xff]
      %v1134 = vld [vmem:[%s6 + $0x28] sm:$0xff]
      %v1135 = vld [vmem:[%s6 + $0x30] sm:$0xff]
      %v1136 = vld [vmem:[%s6 + $0x38] sm:$0xff]
      %v1137 = vld [vmem:[%s6 + $0x40] sm:$0xff]
      %v1138 = vld [vmem:[%s6 + $0x48] sm:$0xff]
      %v1139 = vld [vmem:[%s6 + $0x50] sm:$0xff]
      %v1140 = vld [vmem:[%s6 + $0x58] sm:$0xff]
      %v1141 = vld [vmem:[%s6 + $0x60] sm:$0xff]
      %v1142 = vld [vmem:[%s6 + $0x68] sm:$0xff]
      %v1143 = vld [vmem:[%s6 + $0x70] sm:$0xff]
      %v1144 = vld [vmem:[%s6 + $0x78] sm:$0xff]
      %v1145 = vld [vmem:[%s6 + $0x80] sm:$0xff]
      %v1146 = vld [vmem:[%s6 + $0x88] sm:$0xff]
      %v1147 = vld [vmem:[%s6 + $0x90] sm:$0xff]
      %v1148 = vld [vmem:[%s6 + $0x98] sm:$0xff]
      %v1149 = vld [vmem:[%s6 + $0xa0] sm:$0xff]
      %v1150 = vld [vmem:[%s6 + $0xa8] sm:$0xff]
      %v1151 = vld [vmem:[%s6 + $0xb0] sm:$0xff]
      %v1152 = vld [vmem:[%s6 + $0xb8] sm:$0xff]
      %v1153 = vld [vmem:[%s6 + $0xc0] sm:$0xff]
      %v1154 = vld [vmem:[%s6 + $0xc8] sm:$0xff]
      %v1155 = vld [vmem:[%s6 + $0xd0] sm:$0xff]
      %v1156 = vld [vmem:[%s6 + $0xd8] sm:$0xff]
      %v1157 = vld [vmem:[%s6 + $0xe0] sm:$0xff]
      %v1158 = vld [vmem:[%s6 + $0xe8] sm:$0xff]
      %v1159 = vld [vmem:[%s6 + $0xf0] sm:$0xff]
      %v1160 = vld [vmem:[%s6 + $0xf8] sm:$0xff]
      %v1161 = vld [vmem:[%s6 + $0x100] sm:$0xff]
      %v1162 = vld [vmem:[%s6 + $0x108] sm:$0xff]
      %v1163 = vld [vmem:[%s6 + $0x110] sm:$0xff]
      %v1164 = vld [vmem:[%s6 + $0x118] sm:$0xff]
      %v1165 = vld [vmem:[%s6 + $0x120] sm:$0xff]
      %v1166 = vld [vmem:[%s6 + $0x128] sm:$0xff]
      %v1167 = vld [vmem:[%s6 + $0x130] sm:$0xff]
      %v1168 = vld [vmem:[%s6 + $0x138] sm:$0xff]
      %v1169 = vld [vmem:[%s6 + $0x140] sm:$0xff]
      %v1170 = vld [vmem:[%s6 + $0x148] sm:$0xff]
      %v1171 = vld [vmem:[%s6 + $0x150] sm:$0xff]
      %v1172 = vld [vmem:[%s6 + $0x158] sm:$0xff]
      %v1173 = vld [vmem:[%s6 + $0x160] sm:$0xff]
      %v1174 = vld [vmem:[%s6 + $0x168] sm:$0xff]
      %v1175 = vld [vmem:[%s6 + $0x170] sm:$0xff]
      %v1176 = vld [vmem:[%s6 + $0x178] sm:$0xff]
      %v1177 = vld [vmem:[%s6 + $0x180] sm:$0xff]
      %v1178 = vld [vmem:[%s6 + $0x188] sm:$0xff]
      %v1179 = vld [vmem:[%s6 + $0x190] sm:$0xff]
      %v1180 = vld [vmem:[%s6 + $0x198] sm:$0xff]
      %v1181 = vld [vmem:[%s6 + $0x1a0] sm:$0xff]
      %v1182 = vld [vmem:[%s6 + $0x1a8] sm:$0xff]
      %v1183 = vld [vmem:[%s6 + $0x1b0] sm:$0xff]
      %v1184 = vld [vmem:[%s6 + $0x1b8] sm:$0xff]
      %v1185 = vld [vmem:[%s6 + $0x1c0] sm:$0xff]
      %v1186 = vld [vmem:[%s6 + $0x1c8] sm:$0xff]
      %v1187 = vld [vmem:[%s6 + $0x1d0] sm:$0xff]
      %v1188 = vld [vmem:[%s6 + $0x1d8] sm:$0xff]
      %v1189 = vld [vmem:[%s6 + $0x1e0] sm:$0xff]
      %v1190 = vld [vmem:[%s6 + $0x1e8] sm:$0xff]
      %v1191 = vld [vmem:[%s6 + $0x1f0] sm:$0xff]
      %v1192 = vld [vmem:[%s6 + $0x1f8] sm:$0xff]
      %v1209 = vunpack.c.l.b16 %v1113
      %v1210 = vunpack.c.h.b16 %v1113
      %v1211 = vunpack.c.l.b16 %v1114
      %v1212 = vunpack.c.h.b16 %v1114
      %v1213 = vunpack.c.l.b16 %v1115
      %v1214 = vunpack.c.h.b16 %v1115
      %v1215 = vunpack.c.l.b16 %v1116
      %v1216 = vunpack.c.h.b16 %v1116
      %v1217 = vunpack.c.l.b16 %v1117
      %v1218 = vunpack.c.h.b16 %v1117
      %v1219 = vunpack.c.l.b16 %v1118
      %v1220 = vunpack.c.h.b16 %v1118
      %v1221 = vunpack.c.l.b16 %v1119
      %v1222 = vunpack.c.h.b16 %v1119
      %v1223 = vunpack.c.l.b16 %v1120
      %v1224 = vunpack.c.h.b16 %v1120
      %v1225 = vunpack.c.l.b16 %v1121
      %v1226 = vunpack.c.h.b16 %v1121
      %v1227 = vunpack.c.l.b16 %v1122
      %v1228 = vunpack.c.h.b16 %v1122
      %v1229 = vunpack.c.l.b16 %v1123
      %v1230 = vunpack.c.h.b16 %v1123
      %v1231 = vunpack.c.l.b16 %v1124
      %v1232 = vunpack.c.h.b16 %v1124
      %v1233 = vunpack.c.l.b16 %v1125
      %v1234 = vunpack.c.h.b16 %v1125
      %v1235 = vunpack.c.l.b16 %v1126
      %v1236 = vunpack.c.h.b16 %v1126
      %v1237 = vunpack.c.l.b16 %v1127
      %v1238 = vunpack.c.h.b16 %v1127
      %v1239 = vunpack.c.l.b16 %v1128
      %v1240 = vunpack.c.h.b16 %v1128
      %v1241 = vpack.c.b16 %v1211, %v1209
      %v1242 = vpack.c.b16 %v1212, %v1210
      %v1243 = vpack.c.b16 %v1215, %v1213
      %v1244 = vpack.c.b16 %v1216, %v1214
      %v1245 = vpack.c.b16 %v1219, %v1217
      %v1246 = vpack.c.b16 %v1220, %v1218
      %v1247 = vpack.c.b16 %v1223, %v1221
      %v1248 = vpack.c.b16 %v1224, %v1222
      %v1249 = vpack.c.b16 %v1227, %v1225
      %v1250 = vpack.c.b16 %v1228, %v1226
      %v1251 = vpack.c.b16 %v1231, %v1229
      %v1252 = vpack.c.b16 %v1232, %v1230
      %v1253 = vpack.c.b16 %v1235, %v1233
      %v1254 = vpack.c.b16 %v1236, %v1234
      %v1255 = vpack.c.b16 %v1239, %v1237
      %v1256 = vpack.c.b16 %v1240, %v1238
      %v1337 = vunpack.c.l.b16 %v1129
      %v1338 = vunpack.c.h.b16 %v1129
      %v1339 = vunpack.c.l.b16 %v1130
      %v1340 = vunpack.c.h.b16 %v1130
      %v1341 = vunpack.c.l.b16 %v1131
      %v1342 = vunpack.c.h.b16 %v1131
      %v1343 = vunpack.c.l.b16 %v1132
      %v1344 = vunpack.c.h.b16 %v1132
      %v1345 = vunpack.c.l.b16 %v1133
      %v1346 = vunpack.c.h.b16 %v1133
      %v1347 = vunpack.c.l.b16 %v1134
      %v1348 = vunpack.c.h.b16 %v1134
      %v1349 = vunpack.c.l.b16 %v1135
      %v1350 = vunpack.c.h.b16 %v1135
      %v1351 = vunpack.c.l.b16 %v1136
      %v1352 = vunpack.c.h.b16 %v1136
      %v1353 = vunpack.c.l.b16 %v1137
      %v1354 = vunpack.c.h.b16 %v1137
      %v1355 = vunpack.c.l.b16 %v1138
      %v1356 = vunpack.c.h.b16 %v1138
      %v1357 = vunpack.c.l.b16 %v1139
      %v1358 = vunpack.c.h.b16 %v1139
      %v1359 = vunpack.c.l.b16 %v1140
      %v1360 = vunpack.c.h.b16 %v1140
      %v1361 = vunpack.c.l.b16 %v1141
      %v1362 = vunpack.c.h.b16 %v1141
      %v1363 = vunpack.c.l.b16 %v1142
      %v1364 = vunpack.c.h.b16 %v1142
      %v1365 = vunpack.c.l.b16 %v1143
      %v1366 = vunpack.c.h.b16 %v1143
      %v1367 = vunpack.c.l.b16 %v1144
      %v1368 = vunpack.c.h.b16 %v1144
      %v1369 = vunpack.c.l.b16 %v1145
      %v1370 = vunpack.c.h.b16 %v1145
      %v1371 = vunpack.c.l.b16 %v1146
      %v1372 = vunpack.c.h.b16 %v1146
      %v1373 = vunpack.c.l.b16 %v1147
      %v1374 = vunpack.c.h.b16 %v1147
      %v1375 = vunpack.c.l.b16 %v1148
      %v1376 = vunpack.c.h.b16 %v1148
      %v1377 = vunpack.c.l.b16 %v1149
      %v1378 = vunpack.c.h.b16 %v1149
      %v1379 = vunpack.c.l.b16 %v1150
      %v1380 = vunpack.c.h.b16 %v1150
      %v1381 = vunpack.c.l.b16 %v1151
      %v1382 = vunpack.c.h.b16 %v1151
      %v1383 = vunpack.c.l.b16 %v1152
      %v1384 = vunpack.c.h.b16 %v1152
      %v1385 = vunpack.c.l.b16 %v1153
      %v1386 = vunpack.c.h.b16 %v1153
      %v1387 = vunpack.c.l.b16 %v1154
      %v1388 = vunpack.c.h.b16 %v1154
      %v1389 = vunpack.c.l.b16 %v1155
      %v1390 = vunpack.c.h.b16 %v1155
      %v1391 = vunpack.c.l.b16 %v1156
      %v1392 = vunpack.c.h.b16 %v1156
      %v1393 = vunpack.c.l.b16 %v1157
      %v1394 = vunpack.c.h.b16 %v1157
      %v1395 = vunpack.c.l.b16 %v1158
      %v1396 = vunpack.c.h.b16 %v1158
      %v1397 = vunpack.c.l.b16 %v1159
      %v1398 = vunpack.c.h.b16 %v1159
      %v1399 = vunpack.c.l.b16 %v1160
      %v1400 = vunpack.c.h.b16 %v1160
      %v1401 = vunpack.c.l.b16 %v1161
      %v1402 = vunpack.c.h.b16 %v1161
      %v1403 = vunpack.c.l.b16 %v1162
      %v1404 = vunpack.c.h.b16 %v1162
      %v1405 = vunpack.c.l.b16 %v1163
      %v1406 = vunpack.c.h.b16 %v1163
      %v1407 = vunpack.c.l.b16 %v1164
      %v1408 = vunpack.c.h.b16 %v1164
      %v1409 = vunpack.c.l.b16 %v1165
      %v1410 = vunpack.c.h.b16 %v1165
      %v1411 = vunpack.c.l.b16 %v1166
      %v1412 = vunpack.c.h.b16 %v1166
      %v1413 = vunpack.c.l.b16 %v1167
      %v1414 = vunpack.c.h.b16 %v1167
      %v1415 = vunpack.c.l.b16 %v1168
      %v1416 = vunpack.c.h.b16 %v1168
      %v1417 = vunpack.c.l.b16 %v1169
      %v1418 = vunpack.c.h.b16 %v1169
      %v1419 = vunpack.c.l.b16 %v1170
      %v1420 = vunpack.c.h.b16 %v1170
      %v1421 = vunpack.c.l.b16 %v1171
      %v1422 = vunpack.c.h.b16 %v1171
      %v1423 = vunpack.c.l.b16 %v1172
      %v1424 = vunpack.c.h.b16 %v1172
      %v1425 = vunpack.c.l.b16 %v1173
      %v1426 = vunpack.c.h.b16 %v1173
      %v1427 = vunpack.c.l.b16 %v1174
      %v1428 = vunpack.c.h.b16 %v1174
      %v1429 = vunpack.c.l.b16 %v1175
      %v1430 = vunpack.c.h.b16 %v1175
      %v1431 = vunpack.c.l.b16 %v1176
      %v1432 = vunpack.c.h.b16 %v1176
      %v1433 = vunpack.c.l.b16 %v1177
      %v1434 = vunpack.c.h.b16 %v1177
      %v1435 = vunpack.c.l.b16 %v1178
      %v1436 = vunpack.c.h.b16 %v1178
      %v1437 = vunpack.c.l.b16 %v1179
      %v1438 = vunpack.c.h.b16 %v1179
      %v1439 = vunpack.c.l.b16 %v1180
      %v1440 = vunpack.c.h.b16 %v1180
      %v1441 = vunpack.c.l.b16 %v1181
      %v1442 = vunpack.c.h.b16 %v1181
      %v1443 = vunpack.c.l.b16 %v1182
      %v1444 = vunpack.c.h.b16 %v1182
      %v1445 = vunpack.c.l.b16 %v1183
      %v1446 = vunpack.c.h.b16 %v1183
      %v1447 = vunpack.c.l.b16 %v1184
      %v1448 = vunpack.c.h.b16 %v1184
      %v1449 = vunpack.c.l.b16 %v1185
      %v1450 = vunpack.c.h.b16 %v1185
      %v1451 = vunpack.c.l.b16 %v1186
      %v1452 = vunpack.c.h.b16 %v1186
      %v1453 = vunpack.c.l.b16 %v1187
      %v1454 = vunpack.c.h.b16 %v1187
      %v1455 = vunpack.c.l.b16 %v1188
      %v1456 = vunpack.c.h.b16 %v1188
      %v1457 = vunpack.c.l.b16 %v1189
      %v1458 = vunpack.c.h.b16 %v1189
      %v1459 = vunpack.c.l.b16 %v1190
      %v1460 = vunpack.c.h.b16 %v1190
      %v1461 = vunpack.c.l.b16 %v1191
      %v1462 = vunpack.c.h.b16 %v1191
      %v1463 = vunpack.c.l.b16 %v1192
      %v1464 = vunpack.c.h.b16 %v1192
      %v1465 = vpack.c.b16 %v1341, %v1337
      %v1466 = vpack.c.b16 %v1342, %v1338
      %v1467 = vpack.c.b16 %v1343, %v1339
      %v1468 = vpack.c.b16 %v1344, %v1340
      %v1469 = vpack.c.b16 %v1349, %v1345
      %v1470 = vpack.c.b16 %v1350, %v1346
      %v1471 = vpack.c.b16 %v1351, %v1347
      %v1472 = vpack.c.b16 %v1352, %v1348
      %v1473 = vpack.c.b16 %v1357, %v1353
      %v1474 = vpack.c.b16 %v1358, %v1354
      %v1475 = vpack.c.b16 %v1359, %v1355
      %v1476 = vpack.c.b16 %v1360, %v1356
      %v1477 = vpack.c.b16 %v1365, %v1361
      %v1478 = vpack.c.b16 %v1366, %v1362
      %v1479 = vpack.c.b16 %v1367, %v1363
      %v1480 = vpack.c.b16 %v1368, %v1364
      %v1481 = vpack.c.b16 %v1373, %v1369
      %v1482 = vpack.c.b16 %v1374, %v1370
      %v1483 = vpack.c.b16 %v1375, %v1371
      %v1484 = vpack.c.b16 %v1376, %v1372
      %v1485 = vpack.c.b16 %v1381, %v1377
      %v1486 = vpack.c.b16 %v1382, %v1378
      %v1487 = vpack.c.b16 %v1383, %v1379
      %v1488 = vpack.c.b16 %v1384, %v1380
      %v1489 = vpack.c.b16 %v1389, %v1385
      %v1490 = vpack.c.b16 %v1390, %v1386
      %v1491 = vpack.c.b16 %v1391, %v1387
      %v1492 = vpack.c.b16 %v1392, %v1388
      %v1493 = vpack.c.b16 %v1397, %v1393
      %v1494 = vpack.c.b16 %v1398, %v1394
      %v1495 = vpack.c.b16 %v1399, %v1395
      %v1496 = vpack.c.b16 %v1400, %v1396
      %v1497 = vpack.c.b16 %v1405, %v1401
      %v1498 = vpack.c.b16 %v1406, %v1402
      %v1499 = vpack.c.b16 %v1407, %v1403
      %v1500 = vpack.c.b16 %v1408, %v1404
      %v1501 = vpack.c.b16 %v1413, %v1409
      %v1502 = vpack.c.b16 %v1414, %v1410
      %v1503 = vpack.c.b16 %v1415, %v1411
      %v1504 = vpack.c.b16 %v1416, %v1412
      %v1505 = vpack.c.b16 %v1421, %v1417
      %v1506 = vpack.c.b16 %v1422, %v1418
      %v1507 = vpack.c.b16 %v1423, %v1419
      %v1508 = vpack.c.b16 %v1424, %v1420
      %v1509 = vpack.c.b16 %v1429, %v1425
      %v1510 = vpack.c.b16 %v1430, %v1426
      %v1511 = vpack.c.b16 %v1431, %v1427
      %v1512 = vpack.c.b16 %v1432, %v1428
      %v1513 = vpack.c.b16 %v1437, %v1433
      %v1514 = vpack.c.b16 %v1438, %v1434
      %v1515 = vpack.c.b16 %v1439, %v1435
      %v1516 = vpack.c.b16 %v1440, %v1436
      %v1517 = vpack.c.b16 %v1445, %v1441
      %v1518 = vpack.c.b16 %v1446, %v1442
      %v1519 = vpack.c.b16 %v1447, %v1443
      %v1520 = vpack.c.b16 %v1448, %v1444
      %v1521 = vpack.c.b16 %v1453, %v1449
      %v1522 = vpack.c.b16 %v1454, %v1450
      %v1523 = vpack.c.b16 %v1455, %v1451
      %v1524 = vpack.c.b16 %v1456, %v1452
      %v1525 = vpack.c.b16 %v1461, %v1457
      %v1526 = vpack.c.b16 %v1462, %v1458
      %v1527 = vpack.c.b16 %v1463, %v1459
      %v1528 = vpack.c.b16 %v1464, %v1460
      %1593 = vmatpush.bf16.msra.mxu0 %v1493
      %1594 = vmatpush.bf16.msra.mxu0 %v1489
      %1595 = vmatpush.bf16.msra.mxu0 %v1485
      %1596 = vmatpush.bf16.msra.mxu0 %v1481
      %1597 = vmatpush.bf16.msra.mxu0 %v1477
      %1598 = vmatpush.bf16.msra.mxu0 %v1473
      %1599 = vmatpush.bf16.msra.mxu0 %v1469
      %1600 = vmatpush.bf16.msra.mxu0 %v1465
      %1601 = vmatmul.bf16.gmra.mxu0 %v1241
      %v1602 = vpop.f32.mrf.mxu0
      %v1603 = vadd.f32 0.0, %v1602
      %v1604 = vpop.f32.mrf.mxu0
      %v1605 = vadd.f32 0.0, %v1604
      %1606 = vmatmul.bf16.gmra.mxu0 %v1243
      %v1607 = vpop.f32.mrf.mxu0
      %v1608 = vadd.f32 0.0, %v1607
      %v1609 = vpop.f32.mrf.mxu0
      %v1610 = vadd.f32 0.0, %v1609
      %1611 = vmatmul.bf16.gmra.mxu0 %v1245
      %v1612 = vpop.f32.mrf.mxu0
      %v1613 = vadd.f32 0.0, %v1612
      %v1614 = vpop.f32.mrf.mxu0
      %v1615 = vadd.f32 0.0, %v1614
      %1616 = vmatmul.bf16.gmra.mxu0 %v1247
      %v1617 = vpop.f32.mrf.mxu0
      %v1618 = vadd.f32 0.0, %v1617
      %v1619 = vpop.f32.mrf.mxu0
      %v1620 = vadd.f32 0.0, %v1619
      %1621 = vmatmul.bf16.gmra.mxu0 %v1249
      %v1622 = vpop.f32.mrf.mxu0
      %v1623 = vadd.f32 0.0, %v1622
      %v1624 = vpop.f32.mrf.mxu0
      %v1625 = vadd.f32 0.0, %v1624
      %1626 = vmatmul.bf16.gmra.mxu0 %v1251
      %v1627 = vpop.f32.mrf.mxu0
      %v1628 = vadd.f32 0.0, %v1627
      %v1629 = vpop.f32.mrf.mxu0
      %v1630 = vadd.f32 0.0, %v1629
      %1631 = vmatmul.bf16.gmra.mxu0 %v1253
      %v1632 = vpop.f32.mrf.mxu0
      %v1633 = vadd.f32 0.0, %v1632
      %v1634 = vpop.f32.mrf.mxu0
      %v1635 = vadd.f32 0.0, %v1634
      %1636 = vmatmul.bf16.gmra.mxu0 %v1255
      %v1637 = vpop.f32.mrf.mxu0
      %v1638 = vadd.f32 0.0, %v1637
      %v1639 = vpop.f32.mrf.mxu0
      %v1640 = vadd.f32 0.0, %v1639
      %1641 = vdwg.mxu0
      %1642 = vmatpush.bf16.msra.mxu0 %v1525
      %1643 = vmatpush.bf16.msra.mxu0 %v1521
      %1644 = vmatpush.bf16.msra.mxu0 %v1517
      %1645 = vmatpush.bf16.msra.mxu0 %v1513
      %1646 = vmatpush.bf16.msra.mxu0 %v1509
      %1647 = vmatpush.bf16.msra.mxu0 %v1505
      %1648 = vmatpush.bf16.msra.mxu0 %v1501
      %1649 = vmatpush.bf16.msra.mxu0 %v1497
      %1650 = vmatmul.bf16.gmra.mxu0 %v1242
      %v1651 = vpop.f32.mrf.mxu0
      %v1652 = vadd.f32 %v1603, %v1651
      %v1653 = vpop.f32.mrf.mxu0
      %v1654 = vadd.f32 %v1605, %v1653
      %1655 = vmatmul.bf16.gmra.mxu0 %v1244
      %v1656 = vpop.f32.mrf.mxu0
      %v1657 = vadd.f32 %v1608, %v1656
      %v1658 = vpop.f32.mrf.mxu0
      %v1659 = vadd.f32 %v1610, %v1658
      %1660 = vmatmul.bf16.gmra.mxu0 %v1246
      %v1661 = vpop.f32.mrf.mxu0
      %v1662 = vadd.f32 %v1613, %v1661
      %v1663 = vpop.f32.mrf.mxu0
      %v1664 = vadd.f32 %v1615, %v1663
      %1665 = vmatmul.bf16.gmra.mxu0 %v1248
      %v1666 = vpop.f32.mrf.mxu0
      %v1667 = vadd.f32 %v1618, %v1666
      %v1668 = vpop.f32.mrf.mxu0
      %v1669 = vadd.f32 %v1620, %v1668
      %1670 = vmatmul.bf16.gmra.mxu0 %v1250
      %v1671 = vpop.f32.mrf.mxu0
      %v1672 = vadd.f32 %v1623, %v1671
      %v1673 = vpop.f32.mrf.mxu0
      %v1674 = vadd.f32 %v1625, %v1673
      %1675 = vmatmul.bf16.gmra.mxu0 %v1252
      %v1676 = vpop.f32.mrf.mxu0
      %v1677 = vadd.f32 %v1628, %v1676
      %v1678 = vpop.f32.mrf.mxu0
      %v1679 = vadd.f32 %v1630, %v1678
      %1680 = vmatmul.bf16.gmra.mxu0 %v1254
      %v1681 = vpop.f32.mrf.mxu0
      %v1682 = vadd.f32 %v1633, %v1681
      %v1683 = vpop.f32.mrf.mxu0
      %v1684 = vadd.f32 %v1635, %v1683
      %1685 = vmatmul.bf16.gmra.mxu0 %v1256
      %v1686 = vpop.f32.mrf.mxu0
      %v1687 = vadd.f32 %v1638, %v1686
      %v1688 = vpop.f32.mrf.mxu0
      %v1689 = vadd.f32 %v1640, %v1688
      %1690 = vdwg.mxu0
      %1691 = vmatpush.bf16.msra.mxu0 %v1494
      %1692 = vmatpush.bf16.msra.mxu0 %v1490
      %1693 = vmatpush.bf16.msra.mxu0 %v1486
      %1694 = vmatpush.bf16.msra.mxu0 %v1482
      %1695 = vmatpush.bf16.msra.mxu0 %v1478
      %1696 = vmatpush.bf16.msra.mxu0 %v1474
      %1697 = vmatpush.bf16.msra.mxu0 %v1470
      %1698 = vmatpush.bf16.msra.mxu0 %v1466
      %1699 = vmatmul.bf16.gmra.mxu0 %v1241
      %v1700 = vpop.f32.mrf.mxu0
      %v1701 = vadd.f32 0.0, %v1700
      %v1702 = vpop.f32.mrf.mxu0
      %v1703 = vadd.f32 0.0, %v1702
      %1704 = vmatmul.bf16.gmra.mxu0 %v1243
      %v1705 = vpop.f32.mrf.mxu0
      %v1706 = vadd.f32 0.0, %v1705
      %v1707 = vpop.f32.mrf.mxu0
      %v1708 = vadd.f32 0.0, %v1707
      %1709 = vmatmul.bf16.gmra.mxu0 %v1245
      %v1710 = vpop.f32.mrf.mxu0
      %v1711 = vadd.f32 0.0, %v1710
      %v1712 = vpop.f32.mrf.mxu0
      %v1713 = vadd.f32 0.0, %v1712
      %1714 = vmatmul.bf16.gmra.mxu0 %v1247
      %v1715 = vpop.f32.mrf.mxu0
      %v1716 = vadd.f32 0.0, %v1715
      %v1717 = vpop.f32.mrf.mxu0
      %v1718 = vadd.f32 0.0, %v1717
      %1719 = vmatmul.bf16.gmra.mxu0 %v1249
      %v1720 = vpop.f32.mrf.mxu0
      %v1721 = vadd.f32 0.0, %v1720
      %v1722 = vpop.f32.mrf.mxu0
      %v1723 = vadd.f32 0.0, %v1722
      %1724 = vmatmul.bf16.gmra.mxu0 %v1251
      %v1725 = vpop.f32.mrf.mxu0
      %v1726 = vadd.f32 0.0, %v1725
      %v1727 = vpop.f32.mrf.mxu0
      %v1728 = vadd.f32 0.0, %v1727
      %1729 = vmatmul.bf16.gmra.mxu0 %v1253
      %v1730 = vpop.f32.mrf.mxu0
      %v1731 = vadd.f32 0.0, %v1730
      %v1732 = vpop.f32.mrf.mxu0
      %v1733 = vadd.f32 0.0, %v1732
      %1734 = vmatmul.bf16.gmra.mxu0 %v1255
      %v1735 = vpop.f32.mrf.mxu0
      %v1736 = vadd.f32 0.0, %v1735
      %v1737 = vpop.f32.mrf.mxu0
      %v1738 = vadd.f32 0.0, %v1737
      %1739 = vdwg.mxu0
      %1740 = vmatpush.bf16.msra.mxu0 %v1526
      %1741 = vmatpush.bf16.msra.mxu0 %v1522
      %1742 = vmatpush.bf16.msra.mxu0 %v1518
      %1743 = vmatpush.bf16.msra.mxu0 %v1514
      %1744 = vmatpush.bf16.msra.mxu0 %v1510
      %1745 = vmatpush.bf16.msra.mxu0 %v1506
      %1746 = vmatpush.bf16.msra.mxu0 %v1502
      %1747 = vmatpush.bf16.msra.mxu0 %v1498
      %1748 = vmatmul.bf16.gmra.mxu0 %v1242
      %v1749 = vpop.f32.mrf.mxu0
      %v1750 = vadd.f32 %v1701, %v1749
      %v1751 = vpop.f32.mrf.mxu0
      %v1752 = vadd.f32 %v1703, %v1751
      %1753 = vmatmul.bf16.gmra.mxu0 %v1244
      %v1754 = vpop.f32.mrf.mxu0
      %v1755 = vadd.f32 %v1706, %v1754
      %v1756 = vpop.f32.mrf.mxu0
      %v1757 = vadd.f32 %v1708, %v1756
      %1758 = vmatmul.bf16.gmra.mxu0 %v1246
      %v1759 = vpop.f32.mrf.mxu0
      %v1760 = vadd.f32 %v1711, %v1759
      %v1761 = vpop.f32.mrf.mxu0
      %v1762 = vadd.f32 %v1713, %v1761
      %1763 = vmatmul.bf16.gmra.mxu0 %v1248
      %v1764 = vpop.f32.mrf.mxu0
      %v1765 = vadd.f32 %v1716, %v1764
      %v1766 = vpop.f32.mrf.mxu0
      %v1767 = vadd.f32 %v1718, %v1766
      %1768 = vmatmul.bf16.gmra.mxu0 %v1250
      %v1769 = vpop.f32.mrf.mxu0
      %v1770 = vadd.f32 %v1721, %v1769
      %v1771 = vpop.f32.mrf.mxu0
      %v1772 = vadd.f32 %v1723, %v1771
      %1773 = vmatmul.bf16.gmra.mxu0 %v1252
      %v1774 = vpop.f32.mrf.mxu0
      %v1775 = vadd.f32 %v1726, %v1774
      %v1776 = vpop.f32.mrf.mxu0
      %v1777 = vadd.f32 %v1728, %v1776
      %1778 = vmatmul.bf16.gmra.mxu0 %v1254
      %v1779 = vpop.f32.mrf.mxu0
      %v1780 = vadd.f32 %v1731, %v1779
      %v1781 = vpop.f32.mrf.mxu0
      %v1782 = vadd.f32 %v1733, %v1781
      %1783 = vmatmul.bf16.gmra.mxu0 %v1256
      %v1784 = vpop.f32.mrf.mxu0
      %v1785 = vadd.f32 %v1736, %v1784
      %v1786 = vpop.f32.mrf.mxu0
      %v1787 = vadd.f32 %v1738, %v1786
      %1788 = vdwg.mxu0
      %1789 = vmatpush.bf16.msra.mxu0 %v1495
      %1790 = vmatpush.bf16.msra.mxu0 %v1491
      %1791 = vmatpush.bf16.msra.mxu0 %v1487
      %1792 = vmatpush.bf16.msra.mxu0 %v1483
      %1793 = vmatpush.bf16.msra.mxu0 %v1479
      %1794 = vmatpush.bf16.msra.mxu0 %v1475
      %1795 = vmatpush.bf16.msra.mxu0 %v1471
      %1796 = vmatpush.bf16.msra.mxu0 %v1467
      %1797 = vmatmul.bf16.gmra.mxu0 %v1241
      %v1798 = vpop.f32.mrf.mxu0
      %v1799 = vadd.f32 0.0, %v1798
      %v1800 = vpop.f32.mrf.mxu0
      %v1801 = vadd.f32 0.0, %v1800
      %1802 = vmatmul.bf16.gmra.mxu0 %v1243
      %v1803 = vpop.f32.mrf.mxu0
      %v1804 = vadd.f32 0.0, %v1803
      %v1805 = vpop.f32.mrf.mxu0
      %v1806 = vadd.f32 0.0, %v1805
      %1807 = vmatmul.bf16.gmra.mxu0 %v1245
      %v1808 = vpop.f32.mrf.mxu0
      %v1809 = vadd.f32 0.0, %v1808
      %v1810 = vpop.f32.mrf.mxu0
      %v1811 = vadd.f32 0.0, %v1810
      %1812 = vmatmul.bf16.gmra.mxu0 %v1247
      %v1813 = vpop.f32.mrf.mxu0
      %v1814 = vadd.f32 0.0, %v1813
      %v1815 = vpop.f32.mrf.mxu0
      %v1816 = vadd.f32 0.0, %v1815
      %1817 = vmatmul.bf16.gmra.mxu0 %v1249
      %v1818 = vpop.f32.mrf.mxu0
      %v1819 = vadd.f32 0.0, %v1818
      %v1820 = vpop.f32.mrf.mxu0
      %v1821 = vadd.f32 0.0, %v1820
      %1822 = vmatmul.bf16.gmra.mxu0 %v1251
      %v1823 = vpop.f32.mrf.mxu0
      %v1824 = vadd.f32 0.0, %v1823
      %v1825 = vpop.f32.mrf.mxu0
      %v1826 = vadd.f32 0.0, %v1825
      %1827 = vmatmul.bf16.gmra.mxu0 %v1253
      %v1828 = vpop.f32.mrf.mxu0
      %v1829 = vadd.f32 0.0, %v1828
      %v1830 = vpop.f32.mrf.mxu0
      %v1831 = vadd.f32 0.0, %v1830
      %1832 = vmatmul.bf16.gmra.mxu0 %v1255
      %v1833 = vpop.f32.mrf.mxu0
      %v1834 = vadd.f32 0.0, %v1833
      %v1835 = vpop.f32.mrf.mxu0
      %v1836 = vadd.f32 0.0, %v1835
      %1837 = vdwg.mxu0
      %1838 = vmatpush.bf16.msra.mxu0 %v1527
      %1839 = vmatpush.bf16.msra.mxu0 %v1523
      %1840 = vmatpush.bf16.msra.mxu0 %v1519
      %1841 = vmatpush.bf16.msra.mxu0 %v1515
      %1842 = vmatpush.bf16.msra.mxu0 %v1511
      %1843 = vmatpush.bf16.msra.mxu0 %v1507
      %1844 = vmatpush.bf16.msra.mxu0 %v1503
      %1845 = vmatpush.bf16.msra.mxu0 %v1499
      %1846 = vmatmul.bf16.gmra.mxu0 %v1242
      %v1847 = vpop.f32.mrf.mxu0
      %v1848 = vadd.f32 %v1799, %v1847
      %v1849 = vpop.f32.mrf.mxu0
      %v1850 = vadd.f32 %v1801, %v1849
      %1851 = vmatmul.bf16.gmra.mxu0 %v1244
      %v1852 = vpop.f32.mrf.mxu0
      %v1853 = vadd.f32 %v1804, %v1852
      %v1854 = vpop.f32.mrf.mxu0
      %v1855 = vadd.f32 %v1806, %v1854
      %1856 = vmatmul.bf16.gmra.mxu0 %v1246
      %v1857 = vpop.f32.mrf.mxu0
      %v1858 = vadd.f32 %v1809, %v1857
      %v1859 = vpop.f32.mrf.mxu0
      %v1860 = vadd.f32 %v1811, %v1859
      %1861 = vmatmul.bf16.gmra.mxu0 %v1248
      %v1862 = vpop.f32.mrf.mxu0
      %v1863 = vadd.f32 %v1814, %v1862
      %v1864 = vpop.f32.mrf.mxu0
      %v1865 = vadd.f32 %v1816, %v1864
      %1866 = vmatmul.bf16.gmra.mxu0 %v1250
      %v1867 = vpop.f32.mrf.mxu0
      %v1868 = vadd.f32 %v1819, %v1867
      %v1869 = vpop.f32.mrf.mxu0
      %v1870 = vadd.f32 %v1821, %v1869
      %1871 = vmatmul.bf16.gmra.mxu0 %v1252
      %v1872 = vpop.f32.mrf.mxu0
      %v1873 = vadd.f32 %v1824, %v1872
      %v1874 = vpop.f32.mrf.mxu0
      %v1875 = vadd.f32 %v1826, %v1874
      %1876 = vmatmul.bf16.gmra.mxu0 %v1254
      %v1877 = vpop.f32.mrf.mxu0
      %v1878 = vadd.f32 %v1829, %v1877
      %v1879 = vpop.f32.mrf.mxu0
      %v1880 = vadd.f32 %v1831, %v1879
      %1881 = vmatmul.bf16.gmra.mxu0 %v1256
      %v1882 = vpop.f32.mrf.mxu0
      %v1883 = vadd.f32 %v1834, %v1882
      %v1884 = vpop.f32.mrf.mxu0
      %v1885 = vadd.f32 %v1836, %v1884
      %1886 = vdwg.mxu0
      %1887 = vmatpush.bf16.msra.mxu0 %v1496
      %1888 = vmatpush.bf16.msra.mxu0 %v1492
      %1889 = vmatpush.bf16.msra.mxu0 %v1488
      %1890 = vmatpush.bf16.msra.mxu0 %v1484
      %1891 = vmatpush.bf16.msra.mxu0 %v1480
      %1892 = vmatpush.bf16.msra.mxu0 %v1476
      %1893 = vmatpush.bf16.msra.mxu0 %v1472
      %1894 = vmatpush.bf16.msra.mxu0 %v1468
      %1895 = vmatmul.bf16.gmra.mxu0 %v1241
      %v1896 = vpop.f32.mrf.mxu0
      %v1897 = vadd.f32 0.0, %v1896
      %v1898 = vpop.f32.mrf.mxu0
      %v1899 = vadd.f32 0.0, %v1898
      %1900 = vmatmul.bf16.gmra.mxu0 %v1243
      %v1901 = vpop.f32.mrf.mxu0
      %v1902 = vadd.f32 0.0, %v1901
      %v1903 = vpop.f32.mrf.mxu0
      %v1904 = vadd.f32 0.0, %v1903
      %1905 = vmatmul.bf16.gmra.mxu0 %v1245
      %v1906 = vpop.f32.mrf.mxu0
      %v1907 = vadd.f32 0.0, %v1906
      %v1908 = vpop.f32.mrf.mxu0
      %v1909 = vadd.f32 0.0, %v1908
      %1910 = vmatmul.bf16.gmra.mxu0 %v1247
      %v1911 = vpop.f32.mrf.mxu0
      %v1912 = vadd.f32 0.0, %v1911
      %v1913 = vpop.f32.mrf.mxu0
      %v1914 = vadd.f32 0.0, %v1913
      %1915 = vmatmul.bf16.gmra.mxu0 %v1249
      %v1916 = vpop.f32.mrf.mxu0
      %v1917 = vadd.f32 0.0, %v1916
      %v1918 = vpop.f32.mrf.mxu0
      %v1919 = vadd.f32 0.0, %v1918
      %1920 = vmatmul.bf16.gmra.mxu0 %v1251
      %v1921 = vpop.f32.mrf.mxu0
      %v1922 = vadd.f32 0.0, %v1921
      %v1923 = vpop.f32.mrf.mxu0
      %v1924 = vadd.f32 0.0, %v1923
      %1925 = vmatmul.bf16.gmra.mxu0 %v1253
      %v1926 = vpop.f32.mrf.mxu0
      %v1927 = vadd.f32 0.0, %v1926
      %v1928 = vpop.f32.mrf.mxu0
      %v1929 = vadd.f32 0.0, %v1928
      %1930 = vmatmul.bf16.gmra.mxu0 %v1255
      %v1931 = vpop.f32.mrf.mxu0
      %v1932 = vadd.f32 0.0, %v1931
      %v1933 = vpop.f32.mrf.mxu0
      %v1934 = vadd.f32 0.0, %v1933
      %1935 = vdwg.mxu0
      %1936 = vmatpush.bf16.msra.mxu0 %v1528
      %1937 = vmatpush.bf16.msra.mxu0 %v1524
      %1938 = vmatpush.bf16.msra.mxu0 %v1520
      %1939 = vmatpush.bf16.msra.mxu0 %v1516
      %1940 = vmatpush.bf16.msra.mxu0 %v1512
      %1941 = vmatpush.bf16.msra.mxu0 %v1508
      %1942 = vmatpush.bf16.msra.mxu0 %v1504
      %1943 = vmatpush.bf16.msra.mxu0 %v1500
      %1944 = vmatmul.bf16.gmra.mxu0 %v1242
      %v1945 = vpop.f32.mrf.mxu0
      %v1946 = vadd.f32 %v1897, %v1945
      %v1947 = vpop.f32.mrf.mxu0
      %v1948 = vadd.f32 %v1899, %v1947
      %1949 = vmatmul.bf16.gmra.mxu0 %v1244
      %v1950 = vpop.f32.mrf.mxu0
      %v1951 = vadd.f32 %v1902, %v1950
      %v1952 = vpop.f32.mrf.mxu0
      %v1953 = vadd.f32 %v1904, %v1952
      %1954 = vmatmul.bf16.gmra.mxu0 %v1246
      %v1955 = vpop.f32.mrf.mxu0
      %v1956 = vadd.f32 %v1907, %v1955
      %v1957 = vpop.f32.mrf.mxu0
      %v1958 = vadd.f32 %v1909, %v1957
      %1959 = vmatmul.bf16.gmra.mxu0 %v1248
      %v1960 = vpop.f32.mrf.mxu0
      %v1961 = vadd.f32 %v1912, %v1960
      %v1962 = vpop.f32.mrf.mxu0
      %v1963 = vadd.f32 %v1914, %v1962
      %1964 = vmatmul.bf16.gmra.mxu0 %v1250
      %v1965 = vpop.f32.mrf.mxu0
      %v1966 = vadd.f32 %v1917, %v1965
      %v1967 = vpop.f32.mrf.mxu0
      %v1968 = vadd.f32 %v1919, %v1967
      %1969 = vmatmul.bf16.gmra.mxu0 %v1252
      %v1970 = vpop.f32.mrf.mxu0
      %v1971 = vadd.f32 %v1922, %v1970
      %v1972 = vpop.f32.mrf.mxu0
      %v1973 = vadd.f32 %v1924, %v1972
      %1974 = vmatmul.bf16.gmra.mxu0 %v1254
      %v1975 = vpop.f32.mrf.mxu0
      %v1976 = vadd.f32 %v1927, %v1975
      %v1977 = vpop.f32.mrf.mxu0
      %v1978 = vadd.f32 %v1929, %v1977
      %1979 = vmatmul.bf16.gmra.mxu0 %v1256
      %v1980 = vpop.f32.mrf.mxu0
      %v1981 = vadd.f32 %v1932, %v1980
      %v1982 = vpop.f32.mrf.mxu0
      %v1983 = vadd.f32 %v1934, %v1982
      %1984 = vdwg.mxu0
      %v1985 = vpack.c.bf16 %v1750, %v1652
      %v1986 = vpack.c.bf16 %v1946, %v1848
      %v1987 = vpack.c.bf16 %v1752, %v1654
      %v1988 = vpack.c.bf16 %v1948, %v1850
      %v1989 = vpack.c.bf16 %v1755, %v1657
      %v1990 = vpack.c.bf16 %v1951, %v1853
      %v1991 = vpack.c.bf16 %v1757, %v1659
      %v1992 = vpack.c.bf16 %v1953, %v1855
      %v1993 = vpack.c.bf16 %v1760, %v1662
      %v1994 = vpack.c.bf16 %v1956, %v1858
      %v1995 = vpack.c.bf16 %v1762, %v1664
      %v1996 = vpack.c.bf16 %v1958, %v1860
      %v1997 = vpack.c.bf16 %v1765, %v1667
      %v1998 = vpack.c.bf16 %v1961, %v1863
      %v1999 = vpack.c.bf16 %v1767, %v1669
      %v2000 = vpack.c.bf16 %v1963, %v1865
      %v2001 = vpack.c.bf16 %v1770, %v1672
      %v2002 = vpack.c.bf16 %v1966, %v1868
      %v2003 = vpack.c.bf16 %v1772, %v1674
      %v2004 = vpack.c.bf16 %v1968, %v1870
      %v2005 = vpack.c.bf16 %v1775, %v1677
      %v2006 = vpack.c.bf16 %v1971, %v1873
      %v2007 = vpack.c.bf16 %v1777, %v1679
      %v2008 = vpack.c.bf16 %v1973, %v1875
      %v2009 = vpack.c.bf16 %v1780, %v1682
      %v2010 = vpack.c.bf16 %v1976, %v1878
      %v2011 = vpack.c.bf16 %v1782, %v1684
      %v2012 = vpack.c.bf16 %v1978, %v1880
      %v2013 = vpack.c.bf16 %v1785, %v1687
      %v2014 = vpack.c.bf16 %v1981, %v1883
      %v2015 = vpack.c.bf16 %v1787, %v1689
      %v2016 = vpack.c.bf16 %v1983, %v1885
      %v2017 = vld [vmem:[%s7] sm:$0xf]
      %2019 = vst [vmem:[#allocation1] ss:$9 sm:$0xff] %v2017
      %v2020 = vld [vmem:[#allocation1] sm:$0xff]
      %v2021 = vld [vmem:[#allocation1 + $0x9] sm:$0xff]
      %v2022 = vld [vmem:[#allocation1 + $0x12] sm:$0xff]
      %v2023 = vld [vmem:[#allocation1 + $0x1b] sm:$0xff]
      %v2024 = vpack.i.b16 %v2020, %v2020
      %v2026 = vperm.slane %v2024, 0
      %v2027 = vpack.i.b16 %v2021, %v2021
      %v2029 = vperm.slane %v2027, 0
      %v2030 = vpack.i.b16 %v2022, %v2022
      %v2032 = vperm.slane %v2030, 0
      %v2033 = vpack.i.b16 %v2023, %v2023
      %v2035 = vperm.slane %v2033, 0
      %v2036 = vunpack.c.l.bf16 %v1985
      %v2037 = vunpack.c.h.bf16 %v1985
      %v2038 = vunpack.c.l.bf16 %v1986
      %v2039 = vunpack.c.h.bf16 %v1986
      %v2040 = vunpack.c.l.bf16 %v1987
      %v2041 = vunpack.c.h.bf16 %v1987
      %v2042 = vunpack.c.l.bf16 %v1988
      %v2043 = vunpack.c.h.bf16 %v1988
      %v2044 = vunpack.c.l.bf16 %v1989
      %v2045 = vunpack.c.h.bf16 %v1989
      %v2046 = vunpack.c.l.bf16 %v1990
      %v2047 = vunpack.c.h.bf16 %v1990
      %v2048 = vunpack.c.l.bf16 %v1991
      %v2049 = vunpack.c.h.bf16 %v1991
      %v2050 = vunpack.c.l.bf16 %v1992
      %v2051 = vunpack.c.h.bf16 %v1992
      %v2052 = vunpack.c.l.bf16 %v1993
      %v2053 = vunpack.c.h.bf16 %v1993
      %v2054 = vunpack.c.l.bf16 %v1994
      %v2055 = vunpack.c.h.bf16 %v1994
      %v2056 = vunpack.c.l.bf16 %v1995
      %v2057 = vunpack.c.h.bf16 %v1995
      %v2058 = vunpack.c.l.bf16 %v1996
      %v2059 = vunpack.c.h.bf16 %v1996
      %v2060 = vunpack.c.l.bf16 %v1997
      %v2061 = vunpack.c.h.bf16 %v1997
      %v2062 = vunpack.c.l.bf16 %v1998
      %v2063 = vunpack.c.h.bf16 %v1998
      %v2064 = vunpack.c.l.bf16 %v1999
      %v2065 = vunpack.c.h.bf16 %v1999
      %v2066 = vunpack.c.l.bf16 %v2000
      %v2067 = vunpack.c.h.bf16 %v2000
      %v2068 = vunpack.c.l.bf16 %v2001
      %v2069 = vunpack.c.h.bf16 %v2001
      %v2070 = vunpack.c.l.bf16 %v2002
      %v2071 = vunpack.c.h.bf16 %v2002
      %v2072 = vunpack.c.l.bf16 %v2003
      %v2073 = vunpack.c.h.bf16 %v2003
      %v2074 = vunpack.c.l.bf16 %v2004
      %v2075 = vunpack.c.h.bf16 %v2004
      %v2076 = vunpack.c.l.bf16 %v2005
      %v2077 = vunpack.c.h.bf16 %v2005
      %v2078 = vunpack.c.l.bf16 %v2006
      %v2079 = vunpack.c.h.bf16 %v2006
      %v2080 = vunpack.c.l.bf16 %v2007
      %v2081 = vunpack.c.h.bf16 %v2007
      %v2082 = vunpack.c.l.bf16 %v2008
      %v2083 = vunpack.c.h.bf16 %v2008
      %v2084 = vunpack.c.l.bf16 %v2009
      %v2085 = vunpack.c.h.bf16 %v2009
      %v2086 = vunpack.c.l.bf16 %v2010
      %v2087 = vunpack.c.h.bf16 %v2010
      %v2088 = vunpack.c.l.bf16 %v2011
      %v2089 = vunpack.c.h.bf16 %v2011
      %v2090 = vunpack.c.l.bf16 %v2012
      %v2091 = vunpack.c.h.bf16 %v2012
      %v2092 = vunpack.c.l.bf16 %v2013
      %v2093 = vunpack.c.h.bf16 %v2013
      %v2094 = vunpack.c.l.bf16 %v2014
      %v2095 = vunpack.c.h.bf16 %v2014
      %v2096 = vunpack.c.l.bf16 %v2015
      %v2097 = vunpack.c.h.bf16 %v2015
      %v2098 = vunpack.c.l.bf16 %v2016
      %v2099 = vunpack.c.h.bf16 %v2016
      %v2100 = vunpack.c.l.bf16 %v2026
      %v2101 = vunpack.c.l.bf16 %v2029
      %v2102 = vunpack.c.l.bf16 %v2032
      %v2103 = vunpack.c.l.bf16 %v2035
      %v2104 = vadd.f32 %v2036, %v2100
      %v2105 = vadd.f32 %v2037, %v2101
      %v2106 = vadd.f32 %v2038, %v2102
      %v2107 = vadd.f32 %v2039, %v2103
      %v2108 = vadd.f32 %v2040, %v2100
      %v2109 = vadd.f32 %v2041, %v2101
      %v2110 = vadd.f32 %v2042, %v2102
      %v2111 = vadd.f32 %v2043, %v2103
      %v2112 = vadd.f32 %v2044, %v2100
      %v2113 = vadd.f32 %v2045, %v2101
      %v2114 = vadd.f32 %v2046, %v2102
      %v2115 = vadd.f32 %v2047, %v2103
      %v2116 = vadd.f32 %v2048, %v2100
      %v2117 = vadd.f32 %v2049, %v2101
      %v2118 = vadd.f32 %v2050, %v2102
      %v2119 = vadd.f32 %v2051, %v2103
      %v2120 = vadd.f32 %v2052, %v2100
      %v2121 = vadd.f32 %v2053, %v2101
      %v2122 = vadd.f32 %v2054, %v2102
      %v2123 = vadd.f32 %v2055, %v2103
      %v2124 = vadd.f32 %v2056, %v2100
      %v2125 = vadd.f32 %v2057, %v2101
      %v2126 = vadd.f32 %v2058, %v2102
      %v2127 = vadd.f32 %v2059, %v2103
      %v2128 = vadd.f32 %v2060, %v2100
      %v2129 = vadd.f32 %v2061, %v2101
      %v2130 = vadd.f32 %v2062, %v2102
      %v2131 = vadd.f32 %v2063, %v2103
      %v2132 = vadd.f32 %v2064, %v2100
      %v2133 = vadd.f32 %v2065, %v2101
      %v2134 = vadd.f32 %v2066, %v2102
      %v2135 = vadd.f32 %v2067, %v2103
      %v2136 = vadd.f32 %v2068, %v2100
      %v2137 = vadd.f32 %v2069, %v2101
      %v2138 = vadd.f32 %v2070, %v2102
      %v2139 = vadd.f32 %v2071, %v2103
      %v2140 = vadd.f32 %v2072, %v2100
      %v2141 = vadd.f32 %v2073, %v2101
      %v2142 = vadd.f32 %v2074, %v2102
      %v2143 = vadd.f32 %v2075, %v2103
      %v2144 = vadd.f32 %v2076, %v2100
      %v2145 = vadd.f32 %v2077, %v2101
      %v2146 = vadd.f32 %v2078, %v2102
      %v2147 = vadd.f32 %v2079, %v2103
      %v2148 = vadd.f32 %v2080, %v2100
      %v2149 = vadd.f32 %v2081, %v2101
      %v2150 = vadd.f32 %v2082, %v2102
      %v2151 = vadd.f32 %v2083, %v2103
      %v2152 = vadd.f32 %v2084, %v2100
      %v2153 = vadd.f32 %v2085, %v2101
      %v2154 = vadd.f32 %v2086, %v2102
      %v2155 = vadd.f32 %v2087, %v2103
      %v2156 = vadd.f32 %v2088, %v2100
      %v2157 = vadd.f32 %v2089, %v2101
      %v2158 = vadd.f32 %v2090, %v2102
      %v2159 = vadd.f32 %v2091, %v2103
      %v2160 = vadd.f32 %v2092, %v2100
      %v2161 = vadd.f32 %v2093, %v2101
      %v2162 = vadd.f32 %v2094, %v2102
      %v2163 = vadd.f32 %v2095, %v2103
      %v2164 = vadd.f32 %v2096, %v2100
      %v2165 = vadd.f32 %v2097, %v2101
      %v2166 = vadd.f32 %v2098, %v2102
      %v2167 = vadd.f32 %v2099, %v2103
      %v2168 = vpack.c.bf16 %v2105, %v2104
      %v2169 = vpack.c.bf16 %v2107, %v2106
      %v2170 = vpack.c.bf16 %v2109, %v2108
      %v2171 = vpack.c.bf16 %v2111, %v2110
      %v2172 = vpack.c.bf16 %v2113, %v2112
      %v2173 = vpack.c.bf16 %v2115, %v2114
      %v2174 = vpack.c.bf16 %v2117, %v2116
      %v2175 = vpack.c.bf16 %v2119, %v2118
      %v2176 = vpack.c.bf16 %v2121, %v2120
      %v2177 = vpack.c.bf16 %v2123, %v2122
      %v2178 = vpack.c.bf16 %v2125, %v2124
      %v2179 = vpack.c.bf16 %v2127, %v2126
      %v2180 = vpack.c.bf16 %v2129, %v2128
      %v2181 = vpack.c.bf16 %v2131, %v2130
      %v2182 = vpack.c.bf16 %v2133, %v2132
      %v2183 = vpack.c.bf16 %v2135, %v2134
      %v2184 = vpack.c.bf16 %v2137, %v2136
      %v2185 = vpack.c.bf16 %v2139, %v2138
      %v2186 = vpack.c.bf16 %v2141, %v2140
      %v2187 = vpack.c.bf16 %v2143, %v2142
      %v2188 = vpack.c.bf16 %v2145, %v2144
      %v2189 = vpack.c.bf16 %v2147, %v2146
      %v2190 = vpack.c.bf16 %v2149, %v2148
      %v2191 = vpack.c.bf16 %v2151, %v2150
      %v2192 = vpack.c.bf16 %v2153, %v2152
      %v2193 = vpack.c.bf16 %v2155, %v2154
      %v2194 = vpack.c.bf16 %v2157, %v2156
      %v2195 = vpack.c.bf16 %v2159, %v2158
      %v2196 = vpack.c.bf16 %v2161, %v2160
      %v2197 = vpack.c.bf16 %v2163, %v2162
      %v2198 = vpack.c.bf16 %v2165, %v2164
      %v2199 = vpack.c.bf16 %v2167, %v2166
      %s2200 = sld [smem:[#allocation3 + $0x2]]
      %v2201 = vstv %s2200
      %v2202 = vpack.c.bf16 %v2201, %v2201
      %v2203 = vunpack.c.l.bf16 %v2168
      %v2204 = vunpack.c.h.bf16 %v2168
      %v2205 = vunpack.c.l.bf16 %v2169
      %v2206 = vunpack.c.h.bf16 %v2169
      %v2207 = vunpack.c.l.bf16 %v2170
      %v2208 = vunpack.c.h.bf16 %v2170
      %v2209 = vunpack.c.l.bf16 %v2171
      %v2210 = vunpack.c.h.bf16 %v2171
      %v2211 = vunpack.c.l.bf16 %v2172
      %v2212 = vunpack.c.h.bf16 %v2172
      %v2213 = vunpack.c.l.bf16 %v2173
      %v2214 = vunpack.c.h.bf16 %v2173
      %v2215 = vunpack.c.l.bf16 %v2174
      %v2216 = vunpack.c.h.bf16 %v2174
      %v2217 = vunpack.c.l.bf16 %v2175
      %v2218 = vunpack.c.h.bf16 %v2175
      %v2219 = vunpack.c.l.bf16 %v2176
      %v2220 = vunpack.c.h.bf16 %v2176
      %v2221 = vunpack.c.l.bf16 %v2177
      %v2222 = vunpack.c.h.bf16 %v2177
      %v2223 = vunpack.c.l.bf16 %v2178
      %v2224 = vunpack.c.h.bf16 %v2178
      %v2225 = vunpack.c.l.bf16 %v2179
      %v2226 = vunpack.c.h.bf16 %v2179
      %v2227 = vunpack.c.l.bf16 %v2180
      %v2228 = vunpack.c.h.bf16 %v2180
      %v2229 = vunpack.c.l.bf16 %v2181
      %v2230 = vunpack.c.h.bf16 %v2181
      %v2231 = vunpack.c.l.bf16 %v2182
      %v2232 = vunpack.c.h.bf16 %v2182
      %v2233 = vunpack.c.l.bf16 %v2183
      %v2234 = vunpack.c.h.bf16 %v2183
      %v2235 = vunpack.c.l.bf16 %v2184
      %v2236 = vunpack.c.h.bf16 %v2184
      %v2237 = vunpack.c.l.bf16 %v2185
      %v2238 = vunpack.c.h.bf16 %v2185
      %v2239 = vunpack.c.l.bf16 %v2186
      %v2240 = vunpack.c.h.bf16 %v2186
      %v2241 = vunpack.c.l.bf16 %v2187
      %v2242 = vunpack.c.h.bf16 %v2187
      %v2243 = vunpack.c.l.bf16 %v2188
      %v2244 = vunpack.c.h.bf16 %v2188
      %v2245 = vunpack.c.l.bf16 %v2189
      %v2246 = vunpack.c.h.bf16 %v2189
      %v2247 = vunpack.c.l.bf16 %v2190
      %v2248 = vunpack.c.h.bf16 %v2190
      %v2249 = vunpack.c.l.bf16 %v2191
      %v2250 = vunpack.c.h.bf16 %v2191
      %v2251 = vunpack.c.l.bf16 %v2192
      %v2252 = vunpack.c.h.bf16 %v2192
      %v2253 = vunpack.c.l.bf16 %v2193
      %v2254 = vunpack.c.h.bf16 %v2193
      %v2255 = vunpack.c.l.bf16 %v2194
      %v2256 = vunpack.c.h.bf16 %v2194
      %v2257 = vunpack.c.l.bf16 %v2195
      %v2258 = vunpack.c.h.bf16 %v2195
      %v2259 = vunpack.c.l.bf16 %v2196
      %v2260 = vunpack.c.h.bf16 %v2196
      %v2261 = vunpack.c.l.bf16 %v2197
      %v2262 = vunpack.c.h.bf16 %v2197
      %v2263 = vunpack.c.l.bf16 %v2198
      %v2264 = vunpack.c.h.bf16 %v2198
      %v2265 = vunpack.c.l.bf16 %v2199
      %v2266 = vunpack.c.h.bf16 %v2199
      %vm2267 = vcmp.gt.f32.partialorder %v2203, 0.0
      %vm2268 = vcmp.gt.f32.partialorder %v2204, 0.0
      %vm2269 = vcmp.gt.f32.partialorder %v2205, 0.0
      %vm2270 = vcmp.gt.f32.partialorder %v2206, 0.0
      %vm2271 = vcmp.gt.f32.partialorder %v2207, 0.0
      %vm2272 = vcmp.gt.f32.partialorder %v2208, 0.0
      %vm2273 = vcmp.gt.f32.partialorder %v2209, 0.0
      %vm2274 = vcmp.gt.f32.partialorder %v2210, 0.0
      %vm2275 = vcmp.gt.f32.partialorder %v2211, 0.0
      %vm2276 = vcmp.gt.f32.partialorder %v2212, 0.0
      %vm2277 = vcmp.gt.f32.partialorder %v2213, 0.0
      %vm2278 = vcmp.gt.f32.partialorder %v2214, 0.0
      %vm2279 = vcmp.gt.f32.partialorder %v2215, 0.0
      %vm2280 = vcmp.gt.f32.partialorder %v2216, 0.0
      %vm2281 = vcmp.gt.f32.partialorder %v2217, 0.0
      %vm2282 = vcmp.gt.f32.partialorder %v2218, 0.0
      %vm2283 = vcmp.gt.f32.partialorder %v2219, 0.0
      %vm2284 = vcmp.gt.f32.partialorder %v2220, 0.0
      %vm2285 = vcmp.gt.f32.partialorder %v2221, 0.0
      %vm2286 = vcmp.gt.f32.partialorder %v2222, 0.0
      %vm2287 = vcmp.gt.f32.partialorder %v2223, 0.0
      %vm2288 = vcmp.gt.f32.partialorder %v2224, 0.0
      %vm2289 = vcmp.gt.f32.partialorder %v2225, 0.0
      %vm2290 = vcmp.gt.f32.partialorder %v2226, 0.0
      %vm2291 = vcmp.gt.f32.partialorder %v2227, 0.0
      %vm2292 = vcmp.gt.f32.partialorder %v2228, 0.0
      %vm2293 = vcmp.gt.f32.partialorder %v2229, 0.0
      %vm2294 = vcmp.gt.f32.partialorder %v2230, 0.0
      %vm2295 = vcmp.gt.f32.partialorder %v2231, 0.0
      %vm2296 = vcmp.gt.f32.partialorder %v2232, 0.0
      %vm2297 = vcmp.gt.f32.partialorder %v2233, 0.0
      %vm2298 = vcmp.gt.f32.partialorder %v2234, 0.0
      %vm2299 = vcmp.gt.f32.partialorder %v2235, 0.0
      %vm2300 = vcmp.gt.f32.partialorder %v2236, 0.0
      %vm2301 = vcmp.gt.f32.partialorder %v2237, 0.0
      %vm2302 = vcmp.gt.f32.partialorder %v2238, 0.0
      %vm2303 = vcmp.gt.f32.partialorder %v2239, 0.0
      %vm2304 = vcmp.gt.f32.partialorder %v2240, 0.0
      %vm2305 = vcmp.gt.f32.partialorder %v2241, 0.0
      %vm2306 = vcmp.gt.f32.partialorder %v2242, 0.0
      %vm2307 = vcmp.gt.f32.partialorder %v2243, 0.0
      %vm2308 = vcmp.gt.f32.partialorder %v2244, 0.0
      %vm2309 = vcmp.gt.f32.partialorder %v2245, 0.0
      %vm2310 = vcmp.gt.f32.partialorder %v2246, 0.0
      %vm2311 = vcmp.gt.f32.partialorder %v2247, 0.0
      %vm2312 = vcmp.gt.f32.partialorder %v2248, 0.0
      %vm2313 = vcmp.gt.f32.partialorder %v2249, 0.0
      %vm2314 = vcmp.gt.f32.partialorder %v2250, 0.0
      %vm2315 = vcmp.gt.f32.partialorder %v2251, 0.0
      %vm2316 = vcmp.gt.f32.partialorder %v2252, 0.0
      %vm2317 = vcmp.gt.f32.partialorder %v2253, 0.0
      %vm2318 = vcmp.gt.f32.partialorder %v2254, 0.0
      %vm2319 = vcmp.gt.f32.partialorder %v2255, 0.0
      %vm2320 = vcmp.gt.f32.partialorder %v2256, 0.0
      %vm2321 = vcmp.gt.f32.partialorder %v2257, 0.0
      %vm2322 = vcmp.gt.f32.partialorder %v2258, 0.0
      %vm2323 = vcmp.gt.f32.partialorder %v2259, 0.0
      %vm2324 = vcmp.gt.f32.partialorder %v2260, 0.0
      %vm2325 = vcmp.gt.f32.partialorder %v2261, 0.0
      %vm2326 = vcmp.gt.f32.partialorder %v2262, 0.0
      %vm2327 = vcmp.gt.f32.partialorder %v2263, 0.0
      %vm2328 = vcmp.gt.f32.partialorder %v2264, 0.0
      %vm2329 = vcmp.gt.f32.partialorder %v2265, 0.0
      %vm2330 = vcmp.gt.f32.partialorder %v2266, 0.0
      %v2331 = vunpack.c.l.bf16 %v2202
      %v2332 = vmul.f32 %v2331, %v2203
      %v2333 = vmul.f32 %v2331, %v2204
      %v2334 = vmul.f32 %v2331, %v2205
      %v2335 = vmul.f32 %v2331, %v2206
      %v2336 = vmul.f32 %v2331, %v2207
      %v2337 = vmul.f32 %v2331, %v2208
      %v2338 = vmul.f32 %v2331, %v2209
      %v2339 = vmul.f32 %v2331, %v2210
      %v2340 = vmul.f32 %v2331, %v2211
      %v2341 = vmul.f32 %v2331, %v2212
      %v2342 = vmul.f32 %v2331, %v2213
      %v2343 = vmul.f32 %v2331, %v2214
      %v2344 = vmul.f32 %v2331, %v2215
      %v2345 = vmul.f32 %v2331, %v2216
      %v2346 = vmul.f32 %v2331, %v2217
      %v2347 = vmul.f32 %v2331, %v2218
      %v2348 = vmul.f32 %v2331, %v2219
      %v2349 = vmul.f32 %v2331, %v2220
      %v2350 = vmul.f32 %v2331, %v2221
      %v2351 = vmul.f32 %v2331, %v2222
      %v2352 = vmul.f32 %v2331, %v2223
      %v2353 = vmul.f32 %v2331, %v2224
      %v2354 = vmul.f32 %v2331, %v2225
      %v2355 = vmul.f32 %v2331, %v2226
      %v2356 = vmul.f32 %v2331, %v2227
      %v2357 = vmul.f32 %v2331, %v2228
      %v2358 = vmul.f32 %v2331, %v2229
      %v2359 = vmul.f32 %v2331, %v2230
      %v2360 = vmul.f32 %v2331, %v2231
      %v2361 = vmul.f32 %v2331, %v2232
      %v2362 = vmul.f32 %v2331, %v2233
      %v2363 = vmul.f32 %v2331, %v2234
      %v2364 = vmul.f32 %v2331, %v2235
      %v2365 = vmul.f32 %v2331, %v2236
      %v2366 = vmul.f32 %v2331, %v2237
      %v2367 = vmul.f32 %v2331, %v2238
      %v2368 = vmul.f32 %v2331, %v2239
      %v2369 = vmul.f32 %v2331, %v2240
      %v2370 = vmul.f32 %v2331, %v2241
      %v2371 = vmul.f32 %v2331, %v2242
      %v2372 = vmul.f32 %v2331, %v2243
      %v2373 = vmul.f32 %v2331, %v2244
      %v2374 = vmul.f32 %v2331, %v2245
      %v2375 = vmul.f32 %v2331, %v2246
      %v2376 = vmul.f32 %v2331, %v2247
      %v2377 = vmul.f32 %v2331, %v2248
      %v2378 = vmul.f32 %v2331, %v2249
      %v2379 = vmul.f32 %v2331, %v2250
      %v2380 = vmul.f32 %v2331, %v2251
      %v2381 = vmul.f32 %v2331, %v2252
      %v2382 = vmul.f32 %v2331, %v2253
      %v2383 = vmul.f32 %v2331, %v2254
      %v2384 = vmul.f32 %v2331, %v2255
      %v2385 = vmul.f32 %v2331, %v2256
      %v2386 = vmul.f32 %v2331, %v2257
      %v2387 = vmul.f32 %v2331, %v2258
      %v2388 = vmul.f32 %v2331, %v2259
      %v2389 = vmul.f32 %v2331, %v2260
      %v2390 = vmul.f32 %v2331, %v2261
      %v2391 = vmul.f32 %v2331, %v2262
      %v2392 = vmul.f32 %v2331, %v2263
      %v2393 = vmul.f32 %v2331, %v2264
      %v2394 = vmul.f32 %v2331, %v2265
      %v2395 = vmul.f32 %v2331, %v2266
      %v2396 = vpack.c.bf16 %v2333, %v2332
      %v2397 = vpack.c.bf16 %v2335, %v2334
      %v2398 = vpack.c.bf16 %v2337, %v2336
      %v2399 = vpack.c.bf16 %v2339, %v2338
      %v2400 = vpack.c.bf16 %v2341, %v2340
      %v2401 = vpack.c.bf16 %v2343, %v2342
      %v2402 = vpack.c.bf16 %v2345, %v2344
      %v2403 = vpack.c.bf16 %v2347, %v2346
      %v2404 = vpack.c.bf16 %v2349, %v2348
      %v2405 = vpack.c.bf16 %v2351, %v2350
      %v2406 = vpack.c.bf16 %v2353, %v2352
      %v2407 = vpack.c.bf16 %v2355, %v2354
      %v2408 = vpack.c.bf16 %v2357, %v2356
      %v2409 = vpack.c.bf16 %v2359, %v2358
      %v2410 = vpack.c.bf16 %v2361, %v2360
      %v2411 = vpack.c.bf16 %v2363, %v2362
      %v2412 = vpack.c.bf16 %v2365, %v2364
      %v2413 = vpack.c.bf16 %v2367, %v2366
      %v2414 = vpack.c.bf16 %v2369, %v2368
      %v2415 = vpack.c.bf16 %v2371, %v2370
      %v2416 = vpack.c.bf16 %v2373, %v2372
      %v2417 = vpack.c.bf16 %v2375, %v2374
      %v2418 = vpack.c.bf16 %v2377, %v2376
      %v2419 = vpack.c.bf16 %v2379, %v2378
      %v2420 = vpack.c.bf16 %v2381, %v2380
      %v2421 = vpack.c.bf16 %v2383, %v2382
      %v2422 = vpack.c.bf16 %v2385, %v2384
      %v2423 = vpack.c.bf16 %v2387, %v2386
      %v2424 = vpack.c.bf16 %v2389, %v2388
      %v2425 = vpack.c.bf16 %v2391, %v2390
      %v2426 = vpack.c.bf16 %v2393, %v2392
      %v2427 = vpack.c.bf16 %v2395, %v2394
      %vm2428 = vmpackc.low %vm2268, %vm2267
      %vm2429 = vmpackc.low %vm2270, %vm2269
      %vm2430 = vmpackc.low %vm2272, %vm2271
      %vm2431 = vmpackc.low %vm2274, %vm2273
      %vm2432 = vmpackc.low %vm2276, %vm2275
      %vm2433 = vmpackc.low %vm2278, %vm2277
      %vm2434 = vmpackc.low %vm2280, %vm2279
      %vm2435 = vmpackc.low %vm2282, %vm2281
      %vm2436 = vmpackc.low %vm2284, %vm2283
      %vm2437 = vmpackc.low %vm2286, %vm2285
      %vm2438 = vmpackc.low %vm2288, %vm2287
      %vm2439 = vmpackc.low %vm2290, %vm2289
      %vm2440 = vmpackc.low %vm2292, %vm2291
      %vm2441 = vmpackc.low %vm2294, %vm2293
      %vm2442 = vmpackc.low %vm2296, %vm2295
      %vm2443 = vmpackc.low %vm2298, %vm2297
      %vm2444 = vmpackc.low %vm2300, %vm2299
      %vm2445 = vmpackc.low %vm2302, %vm2301
      %vm2446 = vmpackc.low %vm2304, %vm2303
      %vm2447 = vmpackc.low %vm2306, %vm2305
      %vm2448 = vmpackc.low %vm2308, %vm2307
      %vm2449 = vmpackc.low %vm2310, %vm2309
      %vm2450 = vmpackc.low %vm2312, %vm2311
      %vm2451 = vmpackc.low %vm2314, %vm2313
      %vm2452 = vmpackc.low %vm2316, %vm2315
      %vm2453 = vmpackc.low %vm2318, %vm2317
      %vm2454 = vmpackc.low %vm2320, %vm2319
      %vm2455 = vmpackc.low %vm2322, %vm2321
      %vm2456 = vmpackc.low %vm2324, %vm2323
      %vm2457 = vmpackc.low %vm2326, %vm2325
      %vm2458 = vmpackc.low %vm2328, %vm2327
      %vm2459 = vmpackc.low %vm2330, %vm2329
      %v2460 = vsel %vm2428, %v2168, %v2396
      %v2461 = vsel %vm2429, %v2169, %v2397
      %v2462 = vsel %vm2430, %v2170, %v2398
      %v2463 = vsel %vm2431, %v2171, %v2399
      %v2464 = vsel %vm2432, %v2172, %v2400
      %v2465 = vsel %vm2433, %v2173, %v2401
      %v2466 = vsel %vm2434, %v2174, %v2402
      %v2467 = vsel %vm2435, %v2175, %v2403
      %v2468 = vsel %vm2436, %v2176, %v2404
      %v2469 = vsel %vm2437, %v2177, %v2405
      %v2470 = vsel %vm2438, %v2178, %v2406
      %v2471 = vsel %vm2439, %v2179, %v2407
      %v2472 = vsel %vm2440, %v2180, %v2408
      %v2473 = vsel %vm2441, %v2181, %v2409
      %v2474 = vsel %vm2442, %v2182, %v2410
      %v2475 = vsel %vm2443, %v2183, %v2411
      %v2476 = vsel %vm2444, %v2184, %v2412
      %v2477 = vsel %vm2445, %v2185, %v2413
      %v2478 = vsel %vm2446, %v2186, %v2414
      %v2479 = vsel %vm2447, %v2187, %v2415
      %v2480 = vsel %vm2448, %v2188, %v2416
      %v2481 = vsel %vm2449, %v2189, %v2417
      %v2482 = vsel %vm2450, %v2190, %v2418
      %v2483 = vsel %vm2451, %v2191, %v2419
      %v2484 = vsel %vm2452, %v2192, %v2420
      %v2485 = vsel %vm2453, %v2193, %v2421
      %v2486 = vsel %vm2454, %v2194, %v2422
      %v2487 = vsel %vm2455, %v2195, %v2423
      %v2488 = vsel %vm2456, %v2196, %v2424
      %v2489 = vsel %vm2457, %v2197, %v2425
      %v2490 = vsel %vm2458, %v2198, %v2426
      %v2491 = vsel %vm2459, %v2199, %v2427
      %v2492 = vld [vmem:[%s8] sm:$0xf]
      %v2493 = vld [vmem:[%s8 + $0x4] sm:$0xf]
      %v2494 = vld [vmem:[%s8 + $0x8] sm:$0xf]
      %v2495 = vld [vmem:[%s8 + $0xc] sm:$0xf]
      %v2496 = vld [vmem:[%s8 + $0x10] sm:$0xf]
      %v2497 = vld [vmem:[%s8 + $0x14] sm:$0xf]
      %v2498 = vld [vmem:[%s8 + $0x18] sm:$0xf]
      %v2499 = vld [vmem:[%s8 + $0x1c] sm:$0xf]
      %v2500 = vld [vmem:[%s8 + $0x20] sm:$0xf]
      %v2501 = vld [vmem:[%s8 + $0x24] sm:$0xf]
      %v2502 = vld [vmem:[%s8 + $0x28] sm:$0xf]
      %v2503 = vld [vmem:[%s8 + $0x2c] sm:$0xf]
      %v2504 = vld [vmem:[%s8 + $0x30] sm:$0xf]
      %v2505 = vld [vmem:[%s8 + $0x34] sm:$0xf]
      %v2506 = vld [vmem:[%s8 + $0x38] sm:$0xf]
      %v2507 = vld [vmem:[%s8 + $0x3c] sm:$0xf]
      %v2508 = vld [vmem:[%s8 + $0x40] sm:$0xf]
      %v2509 = vld [vmem:[%s8 + $0x44] sm:$0xf]
      %v2510 = vld [vmem:[%s8 + $0x48] sm:$0xf]
      %v2511 = vld [vmem:[%s8 + $0x4c] sm:$0xf]
      %v2512 = vld [vmem:[%s8 + $0x50] sm:$0xf]
      %v2513 = vld [vmem:[%s8 + $0x54] sm:$0xf]
      %v2514 = vld [vmem:[%s8 + $0x58] sm:$0xf]
      %v2515 = vld [vmem:[%s8 + $0x5c] sm:$0xf]
      %v2516 = vld [vmem:[%s8 + $0x60] sm:$0xf]
      %v2517 = vld [vmem:[%s8 + $0x64] sm:$0xf]
      %v2518 = vld [vmem:[%s8 + $0x68] sm:$0xf]
      %v2519 = vld [vmem:[%s8 + $0x6c] sm:$0xf]
      %v2520 = vld [vmem:[%s8 + $0x70] sm:$0xf]
      %v2521 = vld [vmem:[%s8 + $0x74] sm:$0xf]
      %v2522 = vld [vmem:[%s8 + $0x78] sm:$0xf]
      %v2523 = vld [vmem:[%s8 + $0x7c] sm:$0xf]
      %v2524 = vld [vmem:[%s8 + $0x80] sm:$0xf]
      %v2525 = vld [vmem:[%s8 + $0x84] sm:$0xf]
      %v2526 = vld [vmem:[%s8 + $0x88] sm:$0xf]
      %v2527 = vld [vmem:[%s8 + $0x8c] sm:$0xf]
      %v2528 = vld [vmem:[%s8 + $0x90] sm:$0xf]
      %v2529 = vld [vmem:[%s8 + $0x94] sm:$0xf]
      %v2530 = vld [vmem:[%s8 + $0x98] sm:$0xf]
      %v2531 = vld [vmem:[%s8 + $0x9c] sm:$0xf]
      %v2532 = vld [vmem:[%s8 + $0xa0] sm:$0xf]
      %v2533 = vld [vmem:[%s8 + $0xa4] sm:$0xf]
      %v2534 = vld [vmem:[%s8 + $0xa8] sm:$0xf]
      %v2535 = vld [vmem:[%s8 + $0xac] sm:$0xf]
      %v2536 = vld [vmem:[%s8 + $0xb0] sm:$0xf]
      %v2537 = vld [vmem:[%s8 + $0xb4] sm:$0xf]
      %v2538 = vld [vmem:[%s8 + $0xb8] sm:$0xf]
      %v2539 = vld [vmem:[%s8 + $0xbc] sm:$0xf]
      %v2540 = vld [vmem:[%s8 + $0xc0] sm:$0xf]
      %v2541 = vld [vmem:[%s8 + $0xc4] sm:$0xf]
      %v2542 = vld [vmem:[%s8 + $0xc8] sm:$0xf]
      %v2543 = vld [vmem:[%s8 + $0xcc] sm:$0xf]
      %v2544 = vld [vmem:[%s8 + $0xd0] sm:$0xf]
      %v2545 = vld [vmem:[%s8 + $0xd4] sm:$0xf]
      %v2546 = vld [vmem:[%s8 + $0xd8] sm:$0xf]
      %v2547 = vld [vmem:[%s8 + $0xdc] sm:$0xf]
      %v2548 = vld [vmem:[%s8 + $0xe0] sm:$0xf]
      %v2549 = vld [vmem:[%s8 + $0xe4] sm:$0xf]
      %v2550 = vld [vmem:[%s8 + $0xe8] sm:$0xf]
      %v2551 = vld [vmem:[%s8 + $0xec] sm:$0xf]
      %v2552 = vld [vmem:[%s8 + $0xf0] sm:$0xf]
      %v2553 = vld [vmem:[%s8 + $0xf4] sm:$0xf]
      %v2554 = vld [vmem:[%s8 + $0xf8] sm:$0xf]
      %v2555 = vld [vmem:[%s8 + $0xfc] sm:$0xf]
      %v2556 = vld [vmem:[%s9] sm:$0x1]
      %v2558 = vperm.slane %v2556, 0
      %v2592 = vunpack.c.l.b16 %v2460
      %v2593 = vunpack.c.h.b16 %v2460
      %v2594 = vunpack.c.l.b16 %v2461
      %v2595 = vunpack.c.h.b16 %v2461
      %v2596 = vunpack.c.l.b16 %v2462
      %v2597 = vunpack.c.h.b16 %v2462
      %v2598 = vunpack.c.l.b16 %v2463
      %v2599 = vunpack.c.h.b16 %v2463
      %v2600 = vunpack.c.l.b16 %v2464
      %v2601 = vunpack.c.h.b16 %v2464
      %v2602 = vunpack.c.l.b16 %v2465
      %v2603 = vunpack.c.h.b16 %v2465
      %v2604 = vunpack.c.l.b16 %v2466
      %v2605 = vunpack.c.h.b16 %v2466
      %v2606 = vunpack.c.l.b16 %v2467
      %v2607 = vunpack.c.h.b16 %v2467
      %v2608 = vunpack.c.l.b16 %v2468
      %v2609 = vunpack.c.h.b16 %v2468
      %v2610 = vunpack.c.l.b16 %v2469
      %v2611 = vunpack.c.h.b16 %v2469
      %v2612 = vunpack.c.l.b16 %v2470
      %v2613 = vunpack.c.h.b16 %v2470
      %v2614 = vunpack.c.l.b16 %v2471
      %v2615 = vunpack.c.h.b16 %v2471
      %v2616 = vunpack.c.l.b16 %v2472
      %v2617 = vunpack.c.h.b16 %v2472
      %v2618 = vunpack.c.l.b16 %v2473
      %v2619 = vunpack.c.h.b16 %v2473
      %v2620 = vunpack.c.l.b16 %v2474
      %v2621 = vunpack.c.h.b16 %v2474
      %v2622 = vunpack.c.l.b16 %v2475
      %v2623 = vunpack.c.h.b16 %v2475
      %v2624 = vunpack.c.l.b16 %v2476
      %v2625 = vunpack.c.h.b16 %v2476
      %v2626 = vunpack.c.l.b16 %v2477
      %v2627 = vunpack.c.h.b16 %v2477
      %v2628 = vunpack.c.l.b16 %v2478
      %v2629 = vunpack.c.h.b16 %v2478
      %v2630 = vunpack.c.l.b16 %v2479
      %v2631 = vunpack.c.h.b16 %v2479
      %v2632 = vunpack.c.l.b16 %v2480
      %v2633 = vunpack.c.h.b16 %v2480
      %v2634 = vunpack.c.l.b16 %v2481
      %v2635 = vunpack.c.h.b16 %v2481
      %v2636 = vunpack.c.l.b16 %v2482
      %v2637 = vunpack.c.h.b16 %v2482
      %v2638 = vunpack.c.l.b16 %v2483
      %v2639 = vunpack.c.h.b16 %v2483
      %v2640 = vunpack.c.l.b16 %v2484
      %v2641 = vunpack.c.h.b16 %v2484
      %v2642 = vunpack.c.l.b16 %v2485
      %v2643 = vunpack.c.h.b16 %v2485
      %v2644 = vunpack.c.l.b16 %v2486
      %v2645 = vunpack.c.h.b16 %v2486
      %v2646 = vunpack.c.l.b16 %v2487
      %v2647 = vunpack.c.h.b16 %v2487
      %v2648 = vunpack.c.l.b16 %v2488
      %v2649 = vunpack.c.h.b16 %v2488
      %v2650 = vunpack.c.l.b16 %v2489
      %v2651 = vunpack.c.h.b16 %v2489
      %v2652 = vunpack.c.l.b16 %v2490
      %v2653 = vunpack.c.h.b16 %v2490
      %v2654 = vunpack.c.l.b16 %v2491
      %v2655 = vunpack.c.h.b16 %v2491
      %v2656 = vpack.c.b16 %v2596, %v2592
      %v2657 = vpack.c.b16 %v2597, %v2593
      %v2658 = vpack.c.b16 %v2598, %v2594
      %v2659 = vpack.c.b16 %v2599, %v2595
      %v2660 = vpack.c.b16 %v2604, %v2600
      %v2661 = vpack.c.b16 %v2605, %v2601
      %v2662 = vpack.c.b16 %v2606, %v2602
      %v2663 = vpack.c.b16 %v2607, %v2603
      %v2664 = vpack.c.b16 %v2612, %v2608
      %v2665 = vpack.c.b16 %v2613, %v2609
      %v2666 = vpack.c.b16 %v2614, %v2610
      %v2667 = vpack.c.b16 %v2615, %v2611
      %v2668 = vpack.c.b16 %v2620, %v2616
      %v2669 = vpack.c.b16 %v2621, %v2617
      %v2670 = vpack.c.b16 %v2622, %v2618
      %v2671 = vpack.c.b16 %v2623, %v2619
      %v2672 = vpack.c.b16 %v2628, %v2624
      %v2673 = vpack.c.b16 %v2629, %v2625
      %v2674 = vpack.c.b16 %v2630, %v2626
      %v2675 = vpack.c.b16 %v2631, %v2627
      %v2676 = vpack.c.b16 %v2636, %v2632
      %v2677 = vpack.c.b16 %v2637, %v2633
      %v2678 = vpack.c.b16 %v2638, %v2634
      %v2679 = vpack.c.b16 %v2639, %v2635
      %v2680 = vpack.c.b16 %v2644, %v2640
      %v2681 = vpack.c.b16 %v2645, %v2641
      %v2682 = vpack.c.b16 %v2646, %v2642
      %v2683 = vpack.c.b16 %v2647, %v2643
      %v2684 = vpack.c.b16 %v2652, %v2648
      %v2685 = vpack.c.b16 %v2653, %v2649
      %v2686 = vpack.c.b16 %v2654, %v2650
      %v2687 = vpack.c.b16 %v2655, %v2651
      %v2784 = vunpack.c.l.b16 %v2492
      %v2785 = vunpack.c.l.b16 %v2493
      %v2786 = vunpack.c.l.b16 %v2494
      %v2787 = vunpack.c.l.b16 %v2495
      %v2788 = vunpack.c.l.b16 %v2496
      %v2789 = vunpack.c.l.b16 %v2497
      %v2790 = vunpack.c.l.b16 %v2498
      %v2791 = vunpack.c.l.b16 %v2499
      %v2792 = vunpack.c.l.b16 %v2500
      %v2793 = vunpack.c.l.b16 %v2501
      %v2794 = vunpack.c.l.b16 %v2502
      %v2795 = vunpack.c.l.b16 %v2503
      %v2796 = vunpack.c.l.b16 %v2504
      %v2797 = vunpack.c.l.b16 %v2505
      %v2798 = vunpack.c.l.b16 %v2506
      %v2799 = vunpack.c.l.b16 %v2507
      %v2800 = vunpack.c.l.b16 %v2508
      %v2801 = vunpack.c.l.b16 %v2509
      %v2802 = vunpack.c.l.b16 %v2510
      %v2803 = vunpack.c.l.b16 %v2511
      %v2804 = vunpack.c.l.b16 %v2512
      %v2805 = vunpack.c.l.b16 %v2513
      %v2806 = vunpack.c.l.b16 %v2514
      %v2807 = vunpack.c.l.b16 %v2515
      %v2808 = vunpack.c.l.b16 %v2516
      %v2809 = vunpack.c.l.b16 %v2517
      %v2810 = vunpack.c.l.b16 %v2518
      %v2811 = vunpack.c.l.b16 %v2519
      %v2812 = vunpack.c.l.b16 %v2520
      %v2813 = vunpack.c.l.b16 %v2521
      %v2814 = vunpack.c.l.b16 %v2522
      %v2815 = vunpack.c.l.b16 %v2523
      %v2816 = vunpack.c.l.b16 %v2524
      %v2817 = vunpack.c.l.b16 %v2525
      %v2818 = vunpack.c.l.b16 %v2526
      %v2819 = vunpack.c.l.b16 %v2527
      %v2820 = vunpack.c.l.b16 %v2528
      %v2821 = vunpack.c.l.b16 %v2529
      %v2822 = vunpack.c.l.b16 %v2530
      %v2823 = vunpack.c.l.b16 %v2531
      %v2824 = vunpack.c.l.b16 %v2532
      %v2825 = vunpack.c.l.b16 %v2533
      %v2826 = vunpack.c.l.b16 %v2534
      %v2827 = vunpack.c.l.b16 %v2535
      %v2828 = vunpack.c.l.b16 %v2536
      %v2829 = vunpack.c.l.b16 %v2537
      %v2830 = vunpack.c.l.b16 %v2538
      %v2831 = vunpack.c.l.b16 %v2539
      %v2832 = vunpack.c.l.b16 %v2540
      %v2833 = vunpack.c.l.b16 %v2541
      %v2834 = vunpack.c.l.b16 %v2542
      %v2835 = vunpack.c.l.b16 %v2543
      %v2836 = vunpack.c.l.b16 %v2544
      %v2837 = vunpack.c.l.b16 %v2545
      %v2838 = vunpack.c.l.b16 %v2546
      %v2839 = vunpack.c.l.b16 %v2547
      %v2840 = vunpack.c.l.b16 %v2548
      %v2841 = vunpack.c.l.b16 %v2549
      %v2842 = vunpack.c.l.b16 %v2550
      %v2843 = vunpack.c.l.b16 %v2551
      %v2844 = vunpack.c.l.b16 %v2552
      %v2845 = vunpack.c.l.b16 %v2553
      %v2846 = vunpack.c.l.b16 %v2554
      %v2847 = vunpack.c.l.b16 %v2555
      %v2848 = vpack.c.b16 %v2785, %v2784
      %v2849 = vpack.c.b16 %v2787, %v2786
      %v2850 = vpack.c.b16 %v2789, %v2788
      %v2851 = vpack.c.b16 %v2791, %v2790
      %v2852 = vpack.c.b16 %v2793, %v2792
      %v2853 = vpack.c.b16 %v2795, %v2794
      %v2854 = vpack.c.b16 %v2797, %v2796
      %v2855 = vpack.c.b16 %v2799, %v2798
      %v2856 = vpack.c.b16 %v2801, %v2800
      %v2857 = vpack.c.b16 %v2803, %v2802
      %v2858 = vpack.c.b16 %v2805, %v2804
      %v2859 = vpack.c.b16 %v2807, %v2806
      %v2860 = vpack.c.b16 %v2809, %v2808
      %v2861 = vpack.c.b16 %v2811, %v2810
      %v2862 = vpack.c.b16 %v2813, %v2812
      %v2863 = vpack.c.b16 %v2815, %v2814
      %v2864 = vpack.c.b16 %v2817, %v2816
      %v2865 = vpack.c.b16 %v2819, %v2818
      %v2866 = vpack.c.b16 %v2821, %v2820
      %v2867 = vpack.c.b16 %v2823, %v2822
      %v2868 = vpack.c.b16 %v2825, %v2824
      %v2869 = vpack.c.b16 %v2827, %v2826
      %v2870 = vpack.c.b16 %v2829, %v2828
      %v2871 = vpack.c.b16 %v2831, %v2830
      %v2872 = vpack.c.b16 %v2833, %v2832
      %v2873 = vpack.c.b16 %v2835, %v2834
      %v2874 = vpack.c.b16 %v2837, %v2836
      %v2875 = vpack.c.b16 %v2839, %v2838
      %v2876 = vpack.c.b16 %v2841, %v2840
      %v2877 = vpack.c.b16 %v2843, %v2842
      %v2878 = vpack.c.b16 %v2845, %v2844
      %v2879 = vpack.c.b16 %v2847, %v2846
      %2912 = vmatpush.bf16.msra.mxu0 %v2855
      %2913 = vmatpush.bf16.msra.mxu0 %v2854
      %2914 = vmatpush.bf16.msra.mxu0 %v2853
      %2915 = vmatpush.bf16.msra.mxu0 %v2852
      %2916 = vmatpush.bf16.msra.mxu0 %v2851
      %2917 = vmatpush.bf16.msra.mxu0 %v2850
      %2918 = vmatpush.bf16.msra.mxu0 %v2849
      %2919 = vmatpush.bf16.msra.mxu0 %v2848
      %2920 = vmatmul.bf16.gmra.mxu0 %v2656
      %v2921 = vpop.f32.mrf.mxu0
      %v2922 = vadd.f32 %v2558, %v2921
      %v2923 = vpop.f32.mrf.mxu0
      %v2924 = vadd.f32 %v2558, %v2923
      %2925 = vmatmul.bf16.gmra.mxu0 %v2660
      %v2926 = vpop.f32.mrf.mxu0
      %v2927 = vadd.f32 %v2558, %v2926
      %v2928 = vpop.f32.mrf.mxu0
      %v2929 = vadd.f32 %v2558, %v2928
      %2930 = vmatmul.bf16.gmra.mxu0 %v2664
      %v2931 = vpop.f32.mrf.mxu0
      %v2932 = vadd.f32 %v2558, %v2931
      %v2933 = vpop.f32.mrf.mxu0
      %v2934 = vadd.f32 %v2558, %v2933
      %2935 = vmatmul.bf16.gmra.mxu0 %v2668
      %v2936 = vpop.f32.mrf.mxu0
      %v2937 = vadd.f32 %v2558, %v2936
      %v2938 = vpop.f32.mrf.mxu0
      %v2939 = vadd.f32 %v2558, %v2938
      %2940 = vmatmul.bf16.gmra.mxu0 %v2672
      %v2941 = vpop.f32.mrf.mxu0
      %v2942 = vadd.f32 %v2558, %v2941
      %v2943 = vpop.f32.mrf.mxu0
      %v2944 = vadd.f32 %v2558, %v2943
      %2945 = vmatmul.bf16.gmra.mxu0 %v2676
      %v2946 = vpop.f32.mrf.mxu0
      %v2947 = vadd.f32 %v2558, %v2946
      %v2948 = vpop.f32.mrf.mxu0
      %v2949 = vadd.f32 %v2558, %v2948
      %2950 = vmatmul.bf16.gmra.mxu0 %v2680
      %v2951 = vpop.f32.mrf.mxu0
      %v2952 = vadd.f32 %v2558, %v2951
      %v2953 = vpop.f32.mrf.mxu0
      %v2954 = vadd.f32 %v2558, %v2953
      %2955 = vmatmul.bf16.gmra.mxu0 %v2684
      %v2956 = vpop.f32.mrf.mxu0
      %v2957 = vadd.f32 %v2558, %v2956
      %v2958 = vpop.f32.mrf.mxu0
      %v2959 = vadd.f32 %v2558, %v2958
      %2960 = vdwg.mxu0
      %2961 = vmatpush.bf16.msra.mxu0 %v2863
      %2962 = vmatpush.bf16.msra.mxu0 %v2862
      %2963 = vmatpush.bf16.msra.mxu0 %v2861
      %2964 = vmatpush.bf16.msra.mxu0 %v2860
      %2965 = vmatpush.bf16.msra.mxu0 %v2859
      %2966 = vmatpush.bf16.msra.mxu0 %v2858
      %2967 = vmatpush.bf16.msra.mxu0 %v2857
      %2968 = vmatpush.bf16.msra.mxu0 %v2856
      %2969 = vmatmul.bf16.gmra.mxu0 %v2657
      %v2970 = vpop.f32.mrf.mxu0
      %v2971 = vadd.f32 %v2922, %v2970
      %v2972 = vpop.f32.mrf.mxu0
      %v2973 = vadd.f32 %v2924, %v2972
      %2974 = vmatmul.bf16.gmra.mxu0 %v2661
      %v2975 = vpop.f32.mrf.mxu0
      %v2976 = vadd.f32 %v2927, %v2975
      %v2977 = vpop.f32.mrf.mxu0
      %v2978 = vadd.f32 %v2929, %v2977
      %2979 = vmatmul.bf16.gmra.mxu0 %v2665
      %v2980 = vpop.f32.mrf.mxu0
      %v2981 = vadd.f32 %v2932, %v2980
      %v2982 = vpop.f32.mrf.mxu0
      %v2983 = vadd.f32 %v2934, %v2982
      %2984 = vmatmul.bf16.gmra.mxu0 %v2669
      %v2985 = vpop.f32.mrf.mxu0
      %v2986 = vadd.f32 %v2937, %v2985
      %v2987 = vpop.f32.mrf.mxu0
      %v2988 = vadd.f32 %v2939, %v2987
      %2989 = vmatmul.bf16.gmra.mxu0 %v2673
      %v2990 = vpop.f32.mrf.mxu0
      %v2991 = vadd.f32 %v2942, %v2990
      %v2992 = vpop.f32.mrf.mxu0
      %v2993 = vadd.f32 %v2944, %v2992
      %2994 = vmatmul.bf16.gmra.mxu0 %v2677
      %v2995 = vpop.f32.mrf.mxu0
      %v2996 = vadd.f32 %v2947, %v2995
      %v2997 = vpop.f32.mrf.mxu0
      %v2998 = vadd.f32 %v2949, %v2997
      %2999 = vmatmul.bf16.gmra.mxu0 %v2681
      %v3000 = vpop.f32.mrf.mxu0
      %v3001 = vadd.f32 %v2952, %v3000
      %v3002 = vpop.f32.mrf.mxu0
      %v3003 = vadd.f32 %v2954, %v3002
      %3004 = vmatmul.bf16.gmra.mxu0 %v2685
      %v3005 = vpop.f32.mrf.mxu0
      %v3006 = vadd.f32 %v2957, %v3005
      %v3007 = vpop.f32.mrf.mxu0
      %v3008 = vadd.f32 %v2959, %v3007
      %3009 = vdwg.mxu0
      %3010 = vmatpush.bf16.msra.mxu0 %v2871
      %3011 = vmatpush.bf16.msra.mxu0 %v2870
      %3012 = vmatpush.bf16.msra.mxu0 %v2869
      %3013 = vmatpush.bf16.msra.mxu0 %v2868
      %3014 = vmatpush.bf16.msra.mxu0 %v2867
      %3015 = vmatpush.bf16.msra.mxu0 %v2866
      %3016 = vmatpush.bf16.msra.mxu0 %v2865
      %3017 = vmatpush.bf16.msra.mxu0 %v2864
      %3018 = vmatmul.bf16.gmra.mxu0 %v2658
      %v3019 = vpop.f32.mrf.mxu0
      %v3020 = vadd.f32 %v2971, %v3019
      %v3021 = vpop.f32.mrf.mxu0
      %v3022 = vadd.f32 %v2973, %v3021
      %3023 = vmatmul.bf16.gmra.mxu0 %v2662
      %v3024 = vpop.f32.mrf.mxu0
      %v3025 = vadd.f32 %v2976, %v3024
      %v3026 = vpop.f32.mrf.mxu0
      %v3027 = vadd.f32 %v2978, %v3026
      %3028 = vmatmul.bf16.gmra.mxu0 %v2666
      %v3029 = vpop.f32.mrf.mxu0
      %v3030 = vadd.f32 %v2981, %v3029
      %v3031 = vpop.f32.mrf.mxu0
      %v3032 = vadd.f32 %v2983, %v3031
      %3033 = vmatmul.bf16.gmra.mxu0 %v2670
      %v3034 = vpop.f32.mrf.mxu0
      %v3035 = vadd.f32 %v2986, %v3034
      %v3036 = vpop.f32.mrf.mxu0
      %v3037 = vadd.f32 %v2988, %v3036
      %3038 = vmatmul.bf16.gmra.mxu0 %v2674
      %v3039 = vpop.f32.mrf.mxu0
      %v3040 = vadd.f32 %v2991, %v3039
      %v3041 = vpop.f32.mrf.mxu0
      %v3042 = vadd.f32 %v2993, %v3041
      %3043 = vmatmul.bf16.gmra.mxu0 %v2678
      %v3044 = vpop.f32.mrf.mxu0
      %v3045 = vadd.f32 %v2996, %v3044
      %v3046 = vpop.f32.mrf.mxu0
      %v3047 = vadd.f32 %v2998, %v3046
      %3048 = vmatmul.bf16.gmra.mxu0 %v2682
      %v3049 = vpop.f32.mrf.mxu0
      %v3050 = vadd.f32 %v3001, %v3049
      %v3051 = vpop.f32.mrf.mxu0
      %v3052 = vadd.f32 %v3003, %v3051
      %3053 = vmatmul.bf16.gmra.mxu0 %v2686
      %v3054 = vpop.f32.mrf.mxu0
      %v3055 = vadd.f32 %v3006, %v3054
      %v3056 = vpop.f32.mrf.mxu0
      %v3057 = vadd.f32 %v3008, %v3056
      %3058 = vdwg.mxu0
      %3059 = vmatpush.bf16.msra.mxu0 %v2879
      %3060 = vmatpush.bf16.msra.mxu0 %v2878
      %3061 = vmatpush.bf16.msra.mxu0 %v2877
      %3062 = vmatpush.bf16.msra.mxu0 %v2876
      %3063 = vmatpush.bf16.msra.mxu0 %v2875
      %3064 = vmatpush.bf16.msra.mxu0 %v2874
      %3065 = vmatpush.bf16.msra.mxu0 %v2873
      %3066 = vmatpush.bf16.msra.mxu0 %v2872
      %3067 = vmatmul.bf16.gmra.mxu0 %v2659
      %v3068 = vpop.f32.mrf.mxu0
      %v3069 = vadd.f32 %v3020, %v3068
      %v3070 = vpop.f32.mrf.mxu0
      %v3071 = vadd.f32 %v3022, %v3070
      %3072 = vmatmul.bf16.gmra.mxu0 %v2663
      %v3073 = vpop.f32.mrf.mxu0
      %v3074 = vadd.f32 %v3025, %v3073
      %v3075 = vpop.f32.mrf.mxu0
      %v3076 = vadd.f32 %v3027, %v3075
      %3077 = vmatmul.bf16.gmra.mxu0 %v2667
      %v3078 = vpop.f32.mrf.mxu0
      %v3079 = vadd.f32 %v3030, %v3078
      %v3080 = vpop.f32.mrf.mxu0
      %v3081 = vadd.f32 %v3032, %v3080
      %3082 = vmatmul.bf16.gmra.mxu0 %v2671
      %v3083 = vpop.f32.mrf.mxu0
      %v3084 = vadd.f32 %v3035, %v3083
      %v3085 = vpop.f32.mrf.mxu0
      %v3086 = vadd.f32 %v3037, %v3085
      %3087 = vmatmul.bf16.gmra.mxu0 %v2675
      %v3088 = vpop.f32.mrf.mxu0
      %v3089 = vadd.f32 %v3040, %v3088
      %v3090 = vpop.f32.mrf.mxu0
      %v3091 = vadd.f32 %v3042, %v3090
      %3092 = vmatmul.bf16.gmra.mxu0 %v2679
      %v3093 = vpop.f32.mrf.mxu0
      %v3094 = vadd.f32 %v3045, %v3093
      %v3095 = vpop.f32.mrf.mxu0
      %v3096 = vadd.f32 %v3047, %v3095
      %3097 = vmatmul.bf16.gmra.mxu0 %v2683
      %v3098 = vpop.f32.mrf.mxu0
      %v3099 = vadd.f32 %v3050, %v3098
      %v3100 = vpop.f32.mrf.mxu0
      %v3101 = vadd.f32 %v3052, %v3100
      %3102 = vmatmul.bf16.gmra.mxu0 %v2687
      %v3103 = vpop.f32.mrf.mxu0
      %v3104 = vadd.f32 %v3055, %v3103
      %v3105 = vpop.f32.mrf.mxu0
      %v3106 = vadd.f32 %v3057, %v3105
      %3107 = vdwg.mxu0
      %3108 = vst [vmem:[%s343] sm:$0xff] %v3069
      %3109 = vst [vmem:[%s343 + $0x8] sm:$0xff] %v3071
      %3110 = vst [vmem:[%s343 + $0x10] sm:$0xff] %v3074
      %3111 = vst [vmem:[%s343 + $0x18] sm:$0xff] %v3076
      %3112 = vst [vmem:[%s343 + $0x20] sm:$0xff] %v3079
      %3113 = vst [vmem:[%s343 + $0x28] sm:$0xff] %v3081
      %3114 = vst [vmem:[%s343 + $0x30] sm:$0xff] %v3084
      %3115 = vst [vmem:[%s343 + $0x38] sm:$0xff] %v3086
      %3116 = vst [vmem:[%s343 + $0x40] sm:$0xff] %v3089
      %3117 = vst [vmem:[%s343 + $0x48] sm:$0xff] %v3091
      %3118 = vst [vmem:[%s343 + $0x50] sm:$0xff] %v3094
      %3119 = vst [vmem:[%s343 + $0x58] sm:$0xff] %v3096
      %3120 = vst [vmem:[%s343 + $0x60] sm:$0xff] %v3099
      %3121 = vst [vmem:[%s343 + $0x68] sm:$0xff] %v3101
      %3122 = vst [vmem:[%s343 + $0x70] sm:$0xff] %v3104
      %3123 = vst [vmem:[%s343 + $0x78] sm:$0xff] %v3106
      %s3124 = smul.u32 16, %s29
      %p3125 = scmp.lt.s32.totalorder %s3124, 31
      %s3126 = scalar_select %p3125, %s3124, 31
      %s3127 = smul.addr %s3126, 8
      %s3128 = scalar_lea.vmem %s10, %s3127
      // Predicated region
      $region57: #{decoder_s2d.1} parent=55 // pred_check
        %p3129 = pneg %p241
      $region58: #{decoder_s2d.1} parent=55 // pred_check_branch
        %3131 = sbr.rel (%p3129) target = $region60
      $region59: #{decoder_s2d.1} parent=55 // pred_region
        %s3132 = smul.u32 16, %s29
      $region60: #{decoder_s2d.1} parent=55 // pred_fallthru
        _
    $region56: #{decoder_s2d.1} parent=5 // pred_fallthru
      _
    %p3133 = scmp.le.s32.totalorder 2, %s24
    // Predicated region
    $region61: #{decoder_s2d.1} parent=5 // pred_check
      %p3134 = pneg %p3133
    $region62: #{decoder_s2d.1} parent=5 // pred_check_branch
      %3136 = sbr.rel (%p3134) target = $region64
    $region63: #{decoder_s2d.1} parent=5 // pred_region
      %s3137 = ssub.s32 %s24, 2
      // Predicated region
      $region65: #{decoder_s2d.1} parent=63 // pred_check
        %p3138 = pneg %p247
      $region66: #{decoder_s2d.1} parent=63 // pred_check_branch
        %3140 = sbr.rel (%p3138) target = $region68
      $region67: #{decoder_s2d.1} parent=63 // pred_region
        %s3141 = smul.u32 16, %s30
        %p3142 = scmp.lt.s32.totalorder %s3141, 31
        %s3143 = scalar_select %p3142, %s3141, 31
        %s3144 = smul.addr %s3143, 8
        %s3145 = scalar_lea.vmem %s10, %s3144
      $region68: #{decoder_s2d.1} parent=63 // pred_fallthru
        _
    $region64: #{decoder_s2d.1} parent=5 // pred_fallthru
      _
  $region6: #{decoder_s2d.1} parent=0 // loop_footer
    %s28 = sadd.s32 1, %s24
  $region7: #{decoder_s2d.1} parent=0 // loop_footer_branch
    %23 = sbr.rel target = $region3
  $region8: #{decoder_s2d.1} parent=0 // loop_exit
    _

</llo_original>
